<compile_context>
chip_gen: v7x
topology: tpu7x:2x2x1
jax: 0.10.0
libtpu: 0.0.40
codegen_flags: <defaults>
</compile_context>

<pallas_src>
import functools

import jax
import jax.numpy as jnp
from jax.experimental import pallas as pl
from jax.experimental.pallas import tpu as pltpu


# ----------------------------------------------------------------------------
# Pallas kernel (whole forward pass, fused)
# ----------------------------------------------------------------------------
def _masked_softmax_aggregate(a_src_row, a_dst_col, mask, feat_bf16):
    """alpha_ij = softmax_j( leaky_relu(a_dst[i] + a_src[j]) ) over masked j;
    returns alpha @ feat (f32 accumulation, bf16 MXU operands)."""
    e = a_dst_col + a_src_row                       # [N, N]
    e = jnp.where(e > 0, e, 0.2 * e)                # leaky_relu, slope 0.2
    e = jnp.where(mask, e, jnp.float32(-1e30))
    # Self-loops guarantee a finite row max; masked entries underflow to 0 in
    # exp, so no second masking pass is needed.
    e_max = jnp.max(e, axis=1, keepdims=True)
    p = jnp.exp(e - e_max)
    denom = jnp.sum(p, axis=1, keepdims=True)
    alpha = p * pl.reciprocal(denom, approx=True)
    return jnp.dot(alpha.astype(jnp.bfloat16), feat_bf16,
                   preferred_element_type=jnp.float32)


def _gat_fused_kernel(x_ref, w1_ref, a1_ref, b1_ref,
                      w2_ref, a2_ref, b2_ref,
                      adj_ref, pool_ref,
                      lw1_ref, lb1_ref, lw2_ref, lb2_ref,
                      out_ref, y1_ref, *, heads, hid):
    mask = adj_ref[...] > 0                         # [N, N] (adj passed as bf16)

    # ---- conv1: GATConv(in, hid, heads, concat=True) + ELU ------------------
    h1 = jnp.dot(x_ref[...], w1_ref[...],           # bf16 x bf16 -> f32 acc
                 preferred_element_type=jnp.float32)          # [N, heads*hid]
    h1_bf = h1.astype(jnp.bfloat16)
    # All heads' src/dst attention scores in one MXU matmul: [N, 2*heads]
    # (cols 0..heads-1 = src scores, heads..2*heads-1 = dst scores).
    a_all = jnp.dot(h1, a1_ref[...], preferred_element_type=jnp.float32)
    a_all_t = jnp.transpose(a_all)                  # single [2*heads, N] transpose

    for hd in range(heads):                         # heads is small; static unroll,
        agg = _masked_softmax_aggregate(            # each head fully stored before
            a_all_t[hd:hd + 1, :],                  # the next (bounded live ranges)
            a_all[:, heads + hd:heads + hd + 1],
            mask,
            h1_bf[:, hd * hid:(hd + 1) * hid])
        y1_ref[:, hd * hid:(hd + 1) * hid] = agg    # direct per-head slab store

    y1 = y1_ref[...] + b1_ref[...]
    y1 = jnp.where(y1 > 0, y1, jnp.exp(jnp.minimum(y1, 0.0)) - 1.0)   # ELU

    # ---- conv2: GATConv(hid*heads, hid, heads=1, concat=False) --------------
    h2 = jnp.dot(y1.astype(jnp.bfloat16), w2_ref[...],
                 preferred_element_type=jnp.float32)          # [N, hid]
    a2 = jnp.dot(h2, a2_ref[...], preferred_element_type=jnp.float32)  # [N, 2]
    a2_t = jnp.transpose(a2)                        # [2, N]
    y2 = _masked_softmax_aggregate(a2_t[0:1, :], a2[:, 1:2], mask,
                                   h2.astype(jnp.bfloat16))
    y2 = y2 + b2_ref[...]

    # ---- relu -> global_mean_pool -> relu(lin1) -> lin2 ---------------------
    y2 = jnp.maximum(y2, 0.0)
    pooled = jnp.dot(pool_ref[...], y2, preferred_element_type=jnp.float32)  # [B, hid]
    hmid = jnp.dot(pooled, lw1_ref[...], preferred_element_type=jnp.float32)
    hmid = jnp.maximum(hmid + lb1_ref[...], 0.0)
    out = jnp.dot(hmid, lw2_ref[...], preferred_element_type=jnp.float32) + lb2_ref[...]
    out_ref[...] = out.astype(out_ref.dtype)


# ----------------------------------------------------------------------------
# Wrapper
# ----------------------------------------------------------------------------
def _full_spec(shape):
    return pl.BlockSpec(shape, lambda i: (0,) * len(shape))


def _make_att_matrix(att_src, att_dst):
    """Block-diagonal [heads*f_out, 2*heads]: h @ A gives all per-head
    src scores (cols 0..heads-1) and dst scores (cols heads..2*heads-1)."""
    heads, f_out = att_src.shape
    a = jnp.zeros((heads * f_out, 2 * heads), jnp.float32)
    for hd in range(heads):
        a = a.at[hd * f_out:(hd + 1) * f_out, hd].set(att_src[hd])
        a = a.at[hd * f_out:(hd + 1) * f_out, heads + hd].set(att_dst[hd])
    return a


def gat_forward(params, x, adj, pool_mat, *, heads, hidden):
    n = x.shape[0]
    b = pool_mat.shape[0]
    out_ch = params["lw2"].shape[1]

    a1 = _make_att_matrix(params["as1"], params["ad1"])   # [heads*hid, 2*heads]
    a2 = _make_att_matrix(params["as2"], params["ad2"])   # [hid, 2]

    args = (x.astype(jnp.bfloat16),                # MXU operands in bf16
            params["w1"].astype(jnp.bfloat16),
            a1, params["b1"],
            params["w2"].astype(jnp.bfloat16),
            a2, params["b2"],
            adj.astype(jnp.bfloat16),              # adjacency shrunk to bf16
            pool_mat,
            params["lw1"], params["lb1"], params["lw2"], params["lb2"])

    kernel = functools.partial(_gat_fused_kernel, heads=heads, hid=hidden)
    return pl.pallas_call(
        kernel,
        grid=(1,),
        in_specs=[_full_spec(a.shape) for a in args],
        out_specs=_full_spec((b, out_ch)),
        out_shape=jax.ShapeDtypeStruct((b, out_ch), jnp.float32),
        scratch_shapes=[pltpu.VMEM((n, heads * hidden), jnp.float32)],
        compiler_params=pltpu.CompilerParams(dimension_semantics=("arbitrary",)),
    )(*args)


# ----------------------------------------------------------------------------
# Pure-JAX f32 reference (same math) for a correctness check
# ----------------------------------------------------------------------------
def _gat_conv_ref(x, w, att_src, att_dst, bias, adj, heads, f_out, concat, activation):
    h = x @ w
    outs = []
    for hd in range(heads):
        h_h = h[:, hd * f_out:(hd + 1) * f_out]
        a_src = jnp.sum(h_h * att_src[hd], axis=-1)
        a_dst = jnp.sum(h_h * att_dst[hd], axis=-1)
        e = a_dst[:, None] + a_src[None, :]
        e = jnp.where(e > 0, e, 0.2 * e)
        e = jnp.where(adj > 0, e, -1e30)
        p = jnp.exp(e - jnp.max(e, axis=1, keepdims=True))
        p = jnp.where(adj > 0, p, 0.0)
        alpha = p / jnp.sum(p, axis=1, keepdims=True)
        outs.append(alpha @ h_h)
    y = jnp.concatenate(outs, -1) if concat else sum(outs) / heads
    y = y + bias
    if activation == "elu":
        y = jnp.where(y > 0, y, jnp.exp(jnp.minimum(y, 0.0)) - 1.0)
    return y


def _forward_ref(params, x, adj, pool_mat, heads, hidden):
    x = _gat_conv_ref(x, params["w1"], params["as1"], params["ad1"], params["b1"],
                      adj, heads, hidden, True, "elu")
    x = _gat_conv_ref(x, params["w2"], params["as2"], params["ad2"], params["b2"],
                      adj, 1, hidden, False, "none")
    x = jnp.maximum(x, 0.0)
    x = pool_mat @ x
    x = jnp.maximum(x @ params["lw1"] + params["lb1"], 0.0)
    return x @ params["lw2"] + params["lb2"]


# ----------------------------------------------------------------------------
if __name__ == "__main__":
    # Small synthetic graph batch: B graphs of N_PER nodes each.
    N_PER, B = 16, 2
    N = N_PER * B
    IN_CH, HID, HEADS, OUT_CH = 16, 8, 4, 4

    key = jax.random.PRNGKey(0)
    ks = jax.random.split(key, 12)

    # Node features.
    x = jax.random.normal(ks[0], (N, IN_CH), jnp.float32)

    # Directed ring-ish edges inside each graph: i -> i+1, i -> i+3 (mod N_PER).
    adj = jnp.zeros((N, N), jnp.float32)
    offs = jnp.arange(N_PER)
    for g in range(B):
        base = g * N_PER
        src = base + offs
        adj = adj.at[base + (offs + 1) % N_PER, src].set(1.0)
        adj = adj.at[base + (offs + 3) % N_PER, src].set(1.0)
    adj = jnp.maximum(adj, jnp.eye(N, dtype=jnp.float32))   # PyG add_self_loops=True

    # global_mean_pool as a dense [B, N] averaging matrix.
    batch = jnp.repeat(jnp.arange(B), N_PER)
    one_hot = jax.nn.one_hot(batch, B, dtype=jnp.float32).T          # [B, N]
    pool_mat = one_hot / jnp.sum(one_hot, axis=1, keepdims=True)

    s = 0.1
    params = {
        # conv1: GATConv(IN_CH, HID, heads=HEADS, concat=True)
        "w1":  s * jax.random.normal(ks[1], (IN_CH, HEADS * HID), jnp.float32),
        "as1": s * jax.random.normal(ks[2], (HEADS, HID), jnp.float32),
        "ad1": s * jax.random.normal(ks[3], (HEADS, HID), jnp.float32),
        "b1":  s * jax.random.normal(ks[4], (1, HEADS * HID), jnp.float32),
        # conv2: GATConv(HID*HEADS, HID, heads=1, concat=False)
        "w2":  s * jax.random.normal(ks[5], (HEADS * HID, HID), jnp.float32),
        "as2": s * jax.random.normal(ks[6], (1, HID), jnp.float32),
        "ad2": s * jax.random.normal(ks[7], (1, HID), jnp.float32),
        "b2":  s * jax.random.normal(ks[8], (1, HID), jnp.float32),
        # lin1: Linear(HID, IN_CH), lin2: Linear(IN_CH, OUT_CH)
        "lw1": s * jax.random.normal(ks[9], (HID, IN_CH), jnp.float32),
        "lb1": s * jax.random.normal(ks[10], (1, IN_CH), jnp.float32),
        "lw2": s * jax.random.normal(ks[11], (IN_CH, OUT_CH), jnp.float32),
        "lb2": jnp.zeros((1, OUT_CH), jnp.float32),
    }

    # TODO(synk): F.dropout (p=0.6 / 0.3) is identity in eval mode; training-mode
    # dropout would need pltpu.prng_* and is intentionally not modeled here.
    out = gat_forward(params, x, adj, pool_mat, heads=HEADS, hidden=HID)
    out = jax.block_until_ready(out)

    ref = _forward_ref(params, x, adj, pool_mat, HEADS, HID)
    assert out.shape == (B, OUT_CH)
    assert bool(jnp.all(jnp.isfinite(out)))
    # bf16 MXU operands (f32 accumulation) -> slightly looser tolerance than
    # the pure-f32 reference.
    assert bool(jnp.allclose(out, ref, atol=2e-2, rtol=2e-2)), (out, ref)

    print("KERNEL_OK")
</pallas_src>

<mosaic_0001>
module attributes {stable_mosaic.version = 11 : i64} {
  func.func @_gat_fused_kernel(%arg0: i32, %arg1: memref<32x16xbf16, #tpu.memory_space<vmem>>, %arg2: memref<16x32xbf16, #tpu.memory_space<vmem>>, %arg3: memref<32x8xf32, #tpu.memory_space<vmem>>, %arg4: memref<1x32xf32, #tpu.memory_space<vmem>>, %arg5: memref<32x8xbf16, #tpu.memory_space<vmem>>, %arg6: memref<8x2xf32, #tpu.memory_space<vmem>>, %arg7: memref<1x8xf32, #tpu.memory_space<vmem>>, %arg8: memref<32x32xbf16, #tpu.memory_space<vmem>>, %arg9: memref<2x32xf32, #tpu.memory_space<vmem>>, %arg10: memref<8x16xf32, #tpu.memory_space<vmem>>, %arg11: memref<1x16xf32, #tpu.memory_space<vmem>>, %arg12: memref<16x4xf32, #tpu.memory_space<vmem>>, %arg13: memref<1x4xf32, #tpu.memory_space<vmem>>, %arg14: memref<2x4xf32, #tpu.memory_space<vmem>>, %arg15: memref<32x32xf32, #tpu.memory_space<vmem>>) attributes {dimension_semantics = [#tpu.dimension_semantics<arbitrary>], iteration_bounds = array<i64: 1>, scalar_prefetch = 0 : i64, scratch_operands = 1 : i64, tpu.core_type = #tpu.core_type<tc>, window_params = [{pipeline_mode = #tpu.pipeline_mode<synchronous>, transform_indices = @transform_0, window_bounds = array<i64: 32, 16>}, {pipeline_mode = #tpu.pipeline_mode<synchronous>, transform_indices = @transform_1, window_bounds = array<i64: 16, 32>}, {pipeline_mode = #tpu.pipeline_mode<synchronous>, transform_indices = @transform_2, window_bounds = array<i64: 32, 8>}, {pipeline_mode = #tpu.pipeline_mode<synchronous>, transform_indices = @transform_3, window_bounds = array<i64: 1, 32>}, {pipeline_mode = #tpu.pipeline_mode<synchronous>, transform_indices = @transform_4, window_bounds = array<i64: 32, 8>}, {pipeline_mode = #tpu.pipeline_mode<synchronous>, transform_indices = @transform_5, window_bounds = array<i64: 8, 2>}, {pipeline_mode = #tpu.pipeline_mode<synchronous>, transform_indices = @transform_6, window_bounds = array<i64: 1, 8>}, {pipeline_mode = #tpu.pipeline_mode<synchronous>, transform_indices = @transform_7, window_bounds = array<i64: 32, 32>}, {pipeline_mode = #tpu.pipeline_mode<synchronous>, transform_indices = @transform_8, window_bounds = array<i64: 2, 32>}, {pipeline_mode = #tpu.pipeline_mode<synchronous>, transform_indices = @transform_9, window_bounds = array<i64: 8, 16>}, {pipeline_mode = #tpu.pipeline_mode<synchronous>, transform_indices = @transform_10, window_bounds = array<i64: 1, 16>}, {pipeline_mode = #tpu.pipeline_mode<synchronous>, transform_indices = @transform_11, window_bounds = array<i64: 16, 4>}, {pipeline_mode = #tpu.pipeline_mode<synchronous>, transform_indices = @transform_12, window_bounds = array<i64: 1, 4>}, {pipeline_mode = #tpu.pipeline_mode<synchronous>, transform_indices = @transform_13, window_bounds = array<i64: 2, 4>}]} {
    %c0 = arith.constant 0 : index
    %c0_0 = arith.constant 0 : index
    %0 = vector.load %arg8[%c0, %c0_0] : memref<32x32xbf16, #tpu.memory_space<vmem>>, vector<32x32xbf16>
    %cst = arith.constant 0.000000e+00 : bf16
    %1 = vector.broadcast %cst : bf16 to vector<32x32xbf16>
    %2 = arith.cmpf ogt, %0, %1 : vector<32x32xbf16>
    %c0_1 = arith.constant 0 : index
    %c0_2 = arith.constant 0 : index
    %3 = vector.load %arg1[%c0_1, %c0_2] : memref<32x16xbf16, #tpu.memory_space<vmem>>, vector<32x16xbf16>
    %c0_3 = arith.constant 0 : index
    %c0_4 = arith.constant 0 : index
    %4 = vector.load %arg2[%c0_3, %c0_4] : memref<16x32xbf16, #tpu.memory_space<vmem>>, vector<16x32xbf16>
    %cst_5 = arith.constant dense<0.000000e+00> : vector<32x32xf32>
    %5 = tpu.matmul %3, %4, %cst_5 {dimension_numbers = #tpu.dot_dimension_numbers<[1], [0], [0], [1], [0, 0, 1, 1], [], []>} : vector<32x16xbf16>, vector<16x32xbf16>, vector<32x32xf32> -> vector<32x32xf32>
    %6 = arith.truncf %5 : vector<32x32xf32> to vector<32x32xbf16>
    %c0_6 = arith.constant 0 : index
    %c0_7 = arith.constant 0 : index
    %7 = vector.load %arg3[%c0_6, %c0_7] : memref<32x8xf32, #tpu.memory_space<vmem>>, vector<32x8xf32>
    %cst_8 = arith.constant dense<0.000000e+00> : vector<32x8xf32>
    %8 = tpu.matmul %5, %7, %cst_8 {dimension_numbers = #tpu.dot_dimension_numbers<[1], [0], [0], [1], [0, 0, 1, 1], [], []>} : vector<32x32xf32>, vector<32x8xf32>, vector<32x8xf32> -> vector<32x8xf32>
    %9 = tpu.transpose %8, [1, 0] : vector<32x8xf32> -> vector<8x32xf32>
    %10 = vector.extract_strided_slice %9 {offsets = [0, 0], sizes = [1, 32], strides = [1, 1]} : vector<8x32xf32> to vector<1x32xf32>
    %11 = vector.extract_strided_slice %8 {offsets = [0, 4], sizes = [32, 1], strides = [1, 1]} : vector<32x8xf32> to vector<32x1xf32>
    %12 = vector.extract_strided_slice %6 {offsets = [0, 0], sizes = [32, 8], strides = [1, 1]} : vector<32x32xbf16> to vector<32x8xbf16>
    %13 = vector.broadcast %11 : vector<32x1xf32> to vector<32x32xf32>
    %14 = vector.broadcast %10 : vector<1x32xf32> to vector<32x32xf32>
    %15 = arith.addf %13, %14 : vector<32x32xf32>
    %cst_9 = arith.constant 0.000000e+00 : f32
    %16 = vector.broadcast %cst_9 : f32 to vector<32x32xf32>
    %17 = arith.cmpf ogt, %15, %16 : vector<32x32xf32>
    %cst_10 = arith.constant 2.000000e-01 : f32
    %18 = vector.broadcast %cst_10 : f32 to vector<32x32xf32>
    %19 = arith.mulf %18, %15 : vector<32x32xf32>
    %20 = arith.select %17, %15, %19 : vector<32x32xi1>, vector<32x32xf32>
    %cst_11 = arith.constant -1.000000e+30 : f32
    %21 = vector.broadcast %cst_11 : f32 to vector<32x32xf32>
    %22 = arith.select %2, %20, %21 : vector<32x32xi1>, vector<32x32xf32>
    %cst_12 = arith.constant dense<0xFF800000> : vector<32xf32>
    %23 = vector.multi_reduction <maximumf>, %22, %cst_12 [1] : vector<32x32xf32> to vector<32xf32>
    %24 = vector.shape_cast %23 : vector<32xf32> to vector<32x1xf32>
    %25 = vector.broadcast %24 : vector<32x1xf32> to vector<32x32xf32>
    %26 = arith.subf %22, %25 : vector<32x32xf32>
    %27 = math.exp %26 : vector<32x32xf32>
    %cst_13 = arith.constant dense<0.000000e+00> : vector<32xf32>
    %28 = vector.multi_reduction <add>, %27, %cst_13 [1] : vector<32x32xf32> to vector<32xf32>
    %29 = vector.shape_cast %28 : vector<32xf32> to vector<32x1xf32>
    %30 = tpu.reciprocal %29 {approx = true} : vector<32x1xf32> -> vector<32x1xf32>
    %31 = vector.broadcast %30 : vector<32x1xf32> to vector<32x32xf32>
    %32 = arith.mulf %27, %31 : vector<32x32xf32>
    %33 = arith.truncf %32 : vector<32x32xf32> to vector<32x32xbf16>
    %cst_14 = arith.constant dense<0.000000e+00> : vector<32x8xf32>
    %34 = tpu.matmul %33, %12, %cst_14 {dimension_numbers = #tpu.dot_dimension_numbers<[1], [0], [0], [1], [0, 0, 1, 1], [], []>} : vector<32x32xbf16>, vector<32x8xbf16>, vector<32x8xf32> -> vector<32x8xf32>
    %c0_15 = arith.constant 0 : index
    %c0_16 = arith.constant 0 : index
    %35 = vector.load %arg15[%c0_15, %c0_16] : memref<32x32xf32, #tpu.memory_space<vmem>>, vector<32x8xf32>
    tpu.vector_store %arg15[%c0_15, %c0_16], %34 {strides = array<i32>} : memref<32x32xf32, #tpu.memory_space<vmem>>, vector<32x8xf32>,
    %36 = vector.extract_strided_slice %9 {offsets = [1, 0], sizes = [1, 32], strides = [1, 1]} : vector<8x32xf32> to vector<1x32xf32>
    %37 = vector.extract_strided_slice %8 {offsets = [0, 5], sizes = [32, 1], strides = [1, 1]} : vector<32x8xf32> to vector<32x1xf32>
    %38 = vector.extract_strided_slice %6 {offsets = [0, 8], sizes = [32, 8], strides = [1, 1]} : vector<32x32xbf16> to vector<32x8xbf16>
    %39 = vector.broadcast %37 : vector<32x1xf32> to vector<32x32xf32>
    %40 = vector.broadcast %36 : vector<1x32xf32> to vector<32x32xf32>
    %41 = arith.addf %39, %40 : vector<32x32xf32>
    %cst_17 = arith.constant 0.000000e+00 : f32
    %42 = vector.broadcast %cst_17 : f32 to vector<32x32xf32>
    %43 = arith.cmpf ogt, %41, %42 : vector<32x32xf32>
    %cst_18 = arith.constant 2.000000e-01 : f32
    %44 = vector.broadcast %cst_18 : f32 to vector<32x32xf32>
    %45 = arith.mulf %44, %41 : vector<32x32xf32>
    %46 = arith.select %43, %41, %45 : vector<32x32xi1>, vector<32x32xf32>
    %cst_19 = arith.constant -1.000000e+30 : f32
    %47 = vector.broadcast %cst_19 : f32 to vector<32x32xf32>
    %48 = arith.select %2, %46, %47 : vector<32x32xi1>, vector<32x32xf32>
    %cst_20 = arith.constant dense<0xFF800000> : vector<32xf32>
    %49 = vector.multi_reduction <maximumf>, %48, %cst_20 [1] : vector<32x32xf32> to vector<32xf32>
    %50 = vector.shape_cast %49 : vector<32xf32> to vector<32x1xf32>
    %51 = vector.broadcast %50 : vector<32x1xf32> to vector<32x32xf32>
    %52 = arith.subf %48, %51 : vector<32x32xf32>
    %53 = math.exp %52 : vector<32x32xf32>
    %cst_21 = arith.constant dense<0.000000e+00> : vector<32xf32>
    %54 = vector.multi_reduction <add>, %53, %cst_21 [1] : vector<32x32xf32> to vector<32xf32>
    %55 = vector.shape_cast %54 : vector<32xf32> to vector<32x1xf32>
    %56 = tpu.reciprocal %55 {approx = true} : vector<32x1xf32> -> vector<32x1xf32>
    %57 = vector.broadcast %56 : vector<32x1xf32> to vector<32x32xf32>
    %58 = arith.mulf %53, %57 : vector<32x32xf32>
    %59 = arith.truncf %58 : vector<32x32xf32> to vector<32x32xbf16>
    %cst_22 = arith.constant dense<0.000000e+00> : vector<32x8xf32>
    %60 = tpu.matmul %59, %38, %cst_22 {dimension_numbers = #tpu.dot_dimension_numbers<[1], [0], [0], [1], [0, 0, 1, 1], [], []>} : vector<32x32xbf16>, vector<32x8xbf16>, vector<32x8xf32> -> vector<32x8xf32>
    %c0_23 = arith.constant 0 : index
    %c8 = arith.constant 8 : index
    %61 = vector.load %arg15[%c0_23, %c8] : memref<32x32xf32, #tpu.memory_space<vmem>>, vector<32x8xf32>
    tpu.vector_store %arg15[%c0_23, %c8], %60 {strides = array<i32>} : memref<32x32xf32, #tpu.memory_space<vmem>>, vector<32x8xf32>,
    %62 = vector.extract_strided_slice %9 {offsets = [2, 0], sizes = [1, 32], strides = [1, 1]} : vector<8x32xf32> to vector<1x32xf32>
    %63 = vector.extract_strided_slice %8 {offsets = [0, 6], sizes = [32, 1], strides = [1, 1]} : vector<32x8xf32> to vector<32x1xf32>
    %64 = vector.extract_strided_slice %6 {offsets = [0, 16], sizes = [32, 8], strides = [1, 1]} : vector<32x32xbf16> to vector<32x8xbf16>
    %65 = vector.broadcast %63 : vector<32x1xf32> to vector<32x32xf32>
    %66 = vector.broadcast %62 : vector<1x32xf32> to vector<32x32xf32>
    %67 = arith.addf %65, %66 : vector<32x32xf32>
    %cst_24 = arith.constant 0.000000e+00 : f32
    %68 = vector.broadcast %cst_24 : f32 to vector<32x32xf32>
    %69 = arith.cmpf ogt, %67, %68 : vector<32x32xf32>
    %cst_25 = arith.constant 2.000000e-01 : f32
    %70 = vector.broadcast %cst_25 : f32 to vector<32x32xf32>
    %71 = arith.mulf %70, %67 : vector<32x32xf32>
    %72 = arith.select %69, %67, %71 : vector<32x32xi1>, vector<32x32xf32>
    %cst_26 = arith.constant -1.000000e+30 : f32
    %73 = vector.broadcast %cst_26 : f32 to vector<32x32xf32>
    %74 = arith.select %2, %72, %73 : vector<32x32xi1>, vector<32x32xf32>
    %cst_27 = arith.constant dense<0xFF800000> : vector<32xf32>
    %75 = vector.multi_reduction <maximumf>, %74, %cst_27 [1] : vector<32x32xf32> to vector<32xf32>
    %76 = vector.shape_cast %75 : vector<32xf32> to vector<32x1xf32>
    %77 = vector.broadcast %76 : vector<32x1xf32> to vector<32x32xf32>
    %78 = arith.subf %74, %77 : vector<32x32xf32>
    %79 = math.exp %78 : vector<32x32xf32>
    %cst_28 = arith.constant dense<0.000000e+00> : vector<32xf32>
    %80 = vector.multi_reduction <add>, %79, %cst_28 [1] : vector<32x32xf32> to vector<32xf32>
    %81 = vector.shape_cast %80 : vector<32xf32> to vector<32x1xf32>
    %82 = tpu.reciprocal %81 {approx = true} : vector<32x1xf32> -> vector<32x1xf32>
    %83 = vector.broadcast %82 : vector<32x1xf32> to vector<32x32xf32>
    %84 = arith.mulf %79, %83 : vector<32x32xf32>
    %85 = arith.truncf %84 : vector<32x32xf32> to vector<32x32xbf16>
    %cst_29 = arith.constant dense<0.000000e+00> : vector<32x8xf32>
    %86 = tpu.matmul %85, %64, %cst_29 {dimension_numbers = #tpu.dot_dimension_numbers<[1], [0], [0], [1], [0, 0, 1, 1], [], []>} : vector<32x32xbf16>, vector<32x8xbf16>, vector<32x8xf32> -> vector<32x8xf32>
    %c0_30 = arith.constant 0 : index
    %c16 = arith.constant 16 : index
    %87 = vector.load %arg15[%c0_30, %c16] : memref<32x32xf32, #tpu.memory_space<vmem>>, vector<32x8xf32>
    tpu.vector_store %arg15[%c0_30, %c16], %86 {strides = array<i32>} : memref<32x32xf32, #tpu.memory_space<vmem>>, vector<32x8xf32>,
    %88 = vector.extract_strided_slice %9 {offsets = [3, 0], sizes = [1, 32], strides = [1, 1]} : vector<8x32xf32> to vector<1x32xf32>
    %89 = vector.extract_strided_slice %8 {offsets = [0, 7], sizes = [32, 1], strides = [1, 1]} : vector<32x8xf32> to vector<32x1xf32>
    %90 = vector.extract_strided_slice %6 {offsets = [0, 24], sizes = [32, 8], strides = [1, 1]} : vector<32x32xbf16> to vector<32x8xbf16>
    %91 = vector.broadcast %89 : vector<32x1xf32> to vector<32x32xf32>
    %92 = vector.broadcast %88 : vector<1x32xf32> to vector<32x32xf32>
    %93 = arith.addf %91, %92 : vector<32x32xf32>
    %cst_31 = arith.constant 0.000000e+00 : f32
    %94 = vector.broadcast %cst_31 : f32 to vector<32x32xf32>
    %95 = arith.cmpf ogt, %93, %94 : vector<32x32xf32>
    %cst_32 = arith.constant 2.000000e-01 : f32
    %96 = vector.broadcast %cst_32 : f32 to vector<32x32xf32>
    %97 = arith.mulf %96, %93 : vector<32x32xf32>
    %98 = arith.select %95, %93, %97 : vector<32x32xi1>, vector<32x32xf32>
    %cst_33 = arith.constant -1.000000e+30 : f32
    %99 = vector.broadcast %cst_33 : f32 to vector<32x32xf32>
    %100 = arith.select %2, %98, %99 : vector<32x32xi1>, vector<32x32xf32>
    %cst_34 = arith.constant dense<0xFF800000> : vector<32xf32>
    %101 = vector.multi_reduction <maximumf>, %100, %cst_34 [1] : vector<32x32xf32> to vector<32xf32>
    %102 = vector.shape_cast %101 : vector<32xf32> to vector<32x1xf32>
    %103 = vector.broadcast %102 : vector<32x1xf32> to vector<32x32xf32>
    %104 = arith.subf %100, %103 : vector<32x32xf32>
    %105 = math.exp %104 : vector<32x32xf32>
    %cst_35 = arith.constant dense<0.000000e+00> : vector<32xf32>
    %106 = vector.multi_reduction <add>, %105, %cst_35 [1] : vector<32x32xf32> to vector<32xf32>
    %107 = vector.shape_cast %106 : vector<32xf32> to vector<32x1xf32>
    %108 = tpu.reciprocal %107 {approx = true} : vector<32x1xf32> -> vector<32x1xf32>
    %109 = vector.broadcast %108 : vector<32x1xf32> to vector<32x32xf32>
    %110 = arith.mulf %105, %109 : vector<32x32xf32>
    %111 = arith.truncf %110 : vector<32x32xf32> to vector<32x32xbf16>
    %cst_36 = arith.constant dense<0.000000e+00> : vector<32x8xf32>
    %112 = tpu.matmul %111, %90, %cst_36 {dimension_numbers = #tpu.dot_dimension_numbers<[1], [0], [0], [1], [0, 0, 1, 1], [], []>} : vector<32x32xbf16>, vector<32x8xbf16>, vector<32x8xf32> -> vector<32x8xf32>
    %c0_37 = arith.constant 0 : index
    %c24 = arith.constant 24 : index
    %113 = vector.load %arg15[%c0_37, %c24] : memref<32x32xf32, #tpu.memory_space<vmem>>, vector<32x8xf32>
    tpu.vector_store %arg15[%c0_37, %c24], %112 {strides = array<i32>} : memref<32x32xf32, #tpu.memory_space<vmem>>, vector<32x8xf32>,
    %c0_38 = arith.constant 0 : index
    %c0_39 = arith.constant 0 : index
    %114 = vector.load %arg15[%c0_38, %c0_39] : memref<32x32xf32, #tpu.memory_space<vmem>>, vector<32x32xf32>
    %c0_40 = arith.constant 0 : index
    %c0_41 = arith.constant 0 : index
    %115 = vector.load %arg4[%c0_40, %c0_41] : memref<1x32xf32, #tpu.memory_space<vmem>>, vector<1x32xf32>
    %116 = vector.broadcast %115 : vector<1x32xf32> to vector<32x32xf32>
    %117 = arith.addf %114, %116 : vector<32x32xf32>
    %cst_42 = arith.constant 0.000000e+00 : f32
    %118 = vector.broadcast %cst_42 : f32 to vector<32x32xf32>
    %119 = arith.cmpf ogt, %117, %118 : vector<32x32xf32>
    %cst_43 = arith.constant 0.000000e+00 : f32
    %120 = vector.broadcast %cst_43 : f32 to vector<32x32xf32>
    %121 = arith.minimumf %117, %120 : vector<32x32xf32>
    %122 = math.exp %121 : vector<32x32xf32>
    %cst_44 = arith.constant 1.000000e+00 : f32
    %123 = vector.broadcast %cst_44 : f32 to vector<32x32xf32>
    %124 = arith.subf %122, %123 : vector<32x32xf32>
    %125 = arith.select %119, %117, %124 : vector<32x32xi1>, vector<32x32xf32>
    %126 = arith.truncf %125 : vector<32x32xf32> to vector<32x32xbf16>
    %c0_45 = arith.constant 0 : index
    %c0_46 = arith.constant 0 : index
    %127 = vector.load %arg5[%c0_45, %c0_46] : memref<32x8xbf16, #tpu.memory_space<vmem>>, vector<32x8xbf16>
    %cst_47 = arith.constant dense<0.000000e+00> : vector<32x8xf32>
    %128 = tpu.matmul %126, %127, %cst_47 {dimension_numbers = #tpu.dot_dimension_numbers<[1], [0], [0], [1], [0, 0, 1, 1], [], []>} : vector<32x32xbf16>, vector<32x8xbf16>, vector<32x8xf32> -> vector<32x8xf32>
    %c0_48 = arith.constant 0 : index
    %c0_49 = arith.constant 0 : index
    %129 = vector.load %arg6[%c0_48, %c0_49] : memref<8x2xf32, #tpu.memory_space<vmem>>, vector<8x2xf32>
    %cst_50 = arith.constant dense<0.000000e+00> : vector<32x2xf32>
    %130 = tpu.matmul %128, %129, %cst_50 {dimension_numbers = #tpu.dot_dimension_numbers<[1], [0], [0], [1], [0, 0, 1, 1], [], []>} : vector<32x8xf32>, vector<8x2xf32>, vector<32x2xf32> -> vector<32x2xf32>
    %131 = tpu.transpose %130, [1, 0] : vector<32x2xf32> -> vector<2x32xf32>
    %132 = vector.extract_strided_slice %131 {offsets = [0, 0], sizes = [1, 32], strides = [1, 1]} : vector<2x32xf32> to vector<1x32xf32>
    %133 = vector.extract_strided_slice %130 {offsets = [0, 1], sizes = [32, 1], strides = [1, 1]} : vector<32x2xf32> to vector<32x1xf32>
    %134 = arith.truncf %128 : vector<32x8xf32> to vector<32x8xbf16>
    %135 = vector.broadcast %133 : vector<32x1xf32> to vector<32x32xf32>
    %136 = vector.broadcast %132 : vector<1x32xf32> to vector<32x32xf32>
    %137 = arith.addf %135, %136 : vector<32x32xf32>
    %cst_51 = arith.constant 0.000000e+00 : f32
    %138 = vector.broadcast %cst_51 : f32 to vector<32x32xf32>
    %139 = arith.cmpf ogt, %137, %138 : vector<32x32xf32>
    %cst_52 = arith.constant 2.000000e-01 : f32
    %140 = vector.broadcast %cst_52 : f32 to vector<32x32xf32>
    %141 = arith.mulf %140, %137 : vector<32x32xf32>
    %142 = arith.select %139, %137, %141 : vector<32x32xi1>, vector<32x32xf32>
    %cst_53 = arith.constant -1.000000e+30 : f32
    %143 = vector.broadcast %cst_53 : f32 to vector<32x32xf32>
    %144 = arith.select %2, %142, %143 : vector<32x32xi1>, vector<32x32xf32>
    %cst_54 = arith.constant dense<0xFF800000> : vector<32xf32>
    %145 = vector.multi_reduction <maximumf>, %144, %cst_54 [1] : vector<32x32xf32> to vector<32xf32>
    %146 = vector.shape_cast %145 : vector<32xf32> to vector<32x1xf32>
    %147 = vector.broadcast %146 : vector<32x1xf32> to vector<32x32xf32>
    %148 = arith.subf %144, %147 : vector<32x32xf32>
    %149 = math.exp %148 : vector<32x32xf32>
    %cst_55 = arith.constant dense<0.000000e+00> : vector<32xf32>
    %150 = vector.multi_reduction <add>, %149, %cst_55 [1] : vector<32x32xf32> to vector<32xf32>
    %151 = vector.shape_cast %150 : vector<32xf32> to vector<32x1xf32>
    %152 = tpu.reciprocal %151 {approx = true} : vector<32x1xf32> -> vector<32x1xf32>
    %153 = vector.broadcast %152 : vector<32x1xf32> to vector<32x32xf32>
    %154 = arith.mulf %149, %153 : vector<32x32xf32>
    %155 = arith.truncf %154 : vector<32x32xf32> to vector<32x32xbf16>
    %cst_56 = arith.constant dense<0.000000e+00> : vector<32x8xf32>
    %156 = tpu.matmul %155, %134, %cst_56 {dimension_numbers = #tpu.dot_dimension_numbers<[1], [0], [0], [1], [0, 0, 1, 1], [], []>} : vector<32x32xbf16>, vector<32x8xbf16>, vector<32x8xf32> -> vector<32x8xf32>
    %c0_57 = arith.constant 0 : index
    %c0_58 = arith.constant 0 : index
    %157 = vector.load %arg7[%c0_57, %c0_58] : memref<1x8xf32, #tpu.memory_space<vmem>>, vector<1x8xf32>
    %158 = vector.broadcast %157 : vector<1x8xf32> to vector<32x8xf32>
    %159 = arith.addf %156, %158 : vector<32x8xf32>
    %cst_59 = arith.constant 0.000000e+00 : f32
    %160 = vector.broadcast %cst_59 : f32 to vector<32x8xf32>
    %161 = arith.maximumf %159, %160 : vector<32x8xf32>
    %c0_60 = arith.constant 0 : index
    %c0_61 = arith.constant 0 : index
    %162 = vector.load %arg9[%c0_60, %c0_61] : memref<2x32xf32, #tpu.memory_space<vmem>>, vector<2x32xf32>
    %cst_62 = arith.constant dense<0.000000e+00> : vector<2x8xf32>
    %163 = tpu.matmul %162, %161, %cst_62 {dimension_numbers = #tpu.dot_dimension_numbers<[1], [0], [0], [1], [0, 0, 1, 1], [], []>} : vector<2x32xf32>, vector<32x8xf32>, vector<2x8xf32> -> vector<2x8xf32>
    %c0_63 = arith.constant 0 : index
    %c0_64 = arith.constant 0 : index
    %164 = vector.load %arg10[%c0_63, %c0_64] : memref<8x16xf32, #tpu.memory_space<vmem>>, vector<8x16xf32>
    %cst_65 = arith.constant dense<0.000000e+00> : vector<2x16xf32>
    %165 = tpu.matmul %163, %164, %cst_65 {dimension_numbers = #tpu.dot_dimension_numbers<[1], [0], [0], [1], [0, 0, 1, 1], [], []>} : vector<2x8xf32>, vector<8x16xf32>, vector<2x16xf32> -> vector<2x16xf32>
    %c0_66 = arith.constant 0 : index
    %c0_67 = arith.constant 0 : index
    %166 = vector.load %arg11[%c0_66, %c0_67] : memref<1x16xf32, #tpu.memory_space<vmem>>, vector<1x16xf32>
    %167 = vector.broadcast %166 : vector<1x16xf32> to vector<2x16xf32>
    %168 = arith.addf %165, %167 : vector<2x16xf32>
    %cst_68 = arith.constant 0.000000e+00 : f32
    %169 = vector.broadcast %cst_68 : f32 to vector<2x16xf32>
    %170 = arith.maximumf %168, %169 : vector<2x16xf32>
    %c0_69 = arith.constant 0 : index
    %c0_70 = arith.constant 0 : index
    %171 = vector.load %arg12[%c0_69, %c0_70] : memref<16x4xf32, #tpu.memory_space<vmem>>, vector<16x4xf32>
    %cst_71 = arith.constant dense<0.000000e+00> : vector<2x4xf32>
    %172 = tpu.matmul %170, %171, %cst_71 {dimension_numbers = #tpu.dot_dimension_numbers<[1], [0], [0], [1], [0, 0, 1, 1], [], []>} : vector<2x16xf32>, vector<16x4xf32>, vector<2x4xf32> -> vector<2x4xf32>
    %c0_72 = arith.constant 0 : index
    %c0_73 = arith.constant 0 : index
    %173 = vector.load %arg13[%c0_72, %c0_73] : memref<1x4xf32, #tpu.memory_space<vmem>>, vector<1x4xf32>
    %174 = vector.broadcast %173 : vector<1x4xf32> to vector<2x4xf32>
    %175 = arith.addf %172, %174 : vector<2x4xf32>
    %c0_74 = arith.constant 0 : index
    %c0_75 = arith.constant 0 : index
    %176 = vector.load %arg14[%c0_74, %c0_75] : memref<2x4xf32, #tpu.memory_space<vmem>>, vector<2x4xf32>
    tpu.vector_store %arg14[%c0_74, %c0_75], %175 {strides = array<i32>} : memref<2x4xf32, #tpu.memory_space<vmem>>, vector<2x4xf32>,
    return
  }
  func.func @transform_0(%arg0: i32) -> (i32, i32) {
    %c0_i32 = arith.constant 0 : i32
    %c0_i32_0 = arith.constant 0 : i32
    %c0_i32_1 = arith.constant 0 : i32
    return %c0_i32, %c0_i32_0 : i32, i32
  }
  func.func @transform_1(%arg0: i32) -> (i32, i32) {
    %c0_i32 = arith.constant 0 : i32
    %c0_i32_0 = arith.constant 0 : i32
    %c0_i32_1 = arith.constant 0 : i32
    return %c0_i32, %c0_i32_0 : i32, i32
  }
  func.func @transform_2(%arg0: i32) -> (i32, i32) {
    %c0_i32 = arith.constant 0 : i32
    %c0_i32_0 = arith.constant 0 : i32
    %c0_i32_1 = arith.constant 0 : i32
    return %c0_i32, %c0_i32_0 : i32, i32
  }
  func.func @transform_3(%arg0: i32) -> (i32, i32) {
    %c0_i32 = arith.constant 0 : i32
    %c0_i32_0 = arith.constant 0 : i32
    %c0_i32_1 = arith.constant 0 : i32
    return %c0_i32, %c0_i32_0 : i32, i32
  }
  func.func @transform_4(%arg0: i32) -> (i32, i32) {
    %c0_i32 = arith.constant 0 : i32
    %c0_i32_0 = arith.constant 0 : i32
    %c0_i32_1 = arith.constant 0 : i32
    return %c0_i32, %c0_i32_0 : i32, i32
  }
  func.func @transform_5(%arg0: i32) -> (i32, i32) {
    %c0_i32 = arith.constant 0 : i32
    %c0_i32_0 = arith.constant 0 : i32
    %c0_i32_1 = arith.constant 0 : i32
    return %c0_i32, %c0_i32_0 : i32, i32
  }
  func.func @transform_6(%arg0: i32) -> (i32, i32) {
    %c0_i32 = arith.constant 0 : i32
    %c0_i32_0 = arith.constant 0 : i32
    %c0_i32_1 = arith.constant 0 : i32
    return %c0_i32, %c0_i32_0 : i32, i32
  }
  func.func @transform_7(%arg0: i32) -> (i32, i32) {
    %c0_i32 = arith.constant 0 : i32
    %c0_i32_0 = arith.constant 0 : i32
    %c0_i32_1 = arith.constant 0 : i32
    return %c0_i32, %c0_i32_0 : i32, i32
  }
  func.func @transform_8(%arg0: i32) -> (i32, i32) {
    %c0_i32 = arith.constant 0 : i32
    %c0_i32_0 = arith.constant 0 : i32
    %c0_i32_1 = arith.constant 0 : i32
    return %c0_i32, %c0_i32_0 : i32, i32
  }
  func.func @transform_9(%arg0: i32) -> (i32, i32) {
    %c0_i32 = arith.constant 0 : i32
    %c0_i32_0 = arith.constant 0 : i32
    %c0_i32_1 = arith.constant 0 : i32
    return %c0_i32, %c0_i32_0 : i32, i32
  }
  func.func @transform_10(%arg0: i32) -> (i32, i32) {
    %c0_i32 = arith.constant 0 : i32
    %c0_i32_0 = arith.constant 0 : i32
    %c0_i32_1 = arith.constant 0 : i32
    return %c0_i32, %c0_i32_0 : i32, i32
  }
  func.func @transform_11(%arg0: i32) -> (i32, i32) {
    %c0_i32 = arith.constant 0 : i32
    %c0_i32_0 = arith.constant 0 : i32
    %c0_i32_1 = arith.constant 0 : i32
    return %c0_i32, %c0_i32_0 : i32, i32
  }
  func.func @transform_12(%arg0: i32) -> (i32, i32) {
    %c0_i32 = arith.constant 0 : i32
    %c0_i32_0 = arith.constant 0 : i32
    %c0_i32_1 = arith.constant 0 : i32
    return %c0_i32, %c0_i32_0 : i32, i32
  }
  func.func @transform_13(%arg0: i32) -> (i32, i32) {
    %c0_i32 = arith.constant 0 : i32
    %c0_i32_0 = arith.constant 0 : i32
    %c0_i32_1 = arith.constant 0 : i32
    return %c0_i32, %c0_i32_0 : i32, i32
  }
}

</mosaic_0001>

<llo_original>
// kernel: tpu_custom_call.1
$region0: #{tpu_custom_call.1}
  #allocation0 [shape = 'u32[]', space=smem, size = 0x4, offset = 0x4, fixed_abs, tag = 'smem constant byte address 0x4 - core index']
  #allocation1 [shape = 'u32[144,128]{1,0:T(1,128)}', space=vmem, size = 0x12000, scoped, tag = 'internal scratch']
  #allocation2 [shape = 'f32[32,32]{1,0:T(8,128)}', space=vmem, size = 0x4000, scoped, tag = 'scratch operand']
  %s0 = inlined_call_operand.vmem [shape: bf16[32,16], index: 0, kind: input, shape index: {}]
  %s1 = inlined_call_operand.vmem [shape: bf16[16,32], index: 1, kind: input, shape index: {}]
  %s2 = inlined_call_operand.vmem [shape: f32[32,8], index: 2, kind: input, shape index: {}]
  %s3 = inlined_call_operand.vmem [shape: f32[1,32], index: 3, kind: input, shape index: {}]
  %s4 = inlined_call_operand.vmem [shape: bf16[32,8], index: 4, kind: input, shape index: {}]
  %s5 = inlined_call_operand.vmem [shape: f32[8,2], index: 5, kind: input, shape index: {}]
  %s6 = inlined_call_operand.vmem [shape: f32[1,8], index: 6, kind: input, shape index: {}]
  %s7 = inlined_call_operand.vmem [shape: bf16[32,32], index: 7, kind: input, shape index: {}]
  %s8 = inlined_call_operand.vmem [shape: f32[2,32], index: 8, kind: input, shape index: {}]
  %s9 = inlined_call_operand.vmem [shape: f32[8,16], index: 9, kind: input, shape index: {}]
  %s10 = inlined_call_operand.vmem [shape: f32[1,16], index: 10, kind: input, shape index: {}]
  %s11 = inlined_call_operand.vmem [shape: f32[16,4], index: 11, kind: input, shape index: {}]
  %s12 = inlined_call_operand.vmem [shape: f32[1,4], index: 12, kind: input, shape index: {}]
  %s13 = inlined_call_operand.hbm [shape: f32[2,4], index: 13, kind: output, shape index: {}]
  %s14 = sld [smem:[#allocation0]]
  $region62: #{tpu_custom_call.1} parent=0
    _
  %s16 = ssub.s32 1, %s14
  %s17 = scalar_select 0, %s16, %s14
  $region1: #{tpu_custom_call.1} parent=0
    #allocation3 [shape = 'u8[1024]{0}', space=vmem, size = 0x400, scoped, tag = 'output window, operand 0, single buffered']
    #allocation4 [shape = 's32[1]{0}', space=sflag, size = 0x4, scoped, tag = 'scoped memory for tpu_custom_call.1']
    %18 = vsyncpa [#allocation4], 0
    // Predicated region
    $region2: #{tpu_custom_call.1} parent=1 // pred_check
      _
    $region3: #{tpu_custom_call.1} parent=1 // pred_check_branch
      %20 = sbr.rel (0) target = $region5
    $region4: #{tpu_custom_call.1} parent=1 // pred_region
      _
    $region5: #{tpu_custom_call.1} parent=1 // pred_fallthru
      _
    // Predicated region
    $region6: #{tpu_custom_call.1} parent=1 // pred_check
      _
    $region7: #{tpu_custom_call.1} parent=1 // pred_check_branch
      %22 = sbr.rel (0) target = $region9
    $region8: #{tpu_custom_call.1} parent=1 // pred_region
      _
    $region9: #{tpu_custom_call.1} parent=1 // pred_fallthru
      _
    // Predicated region
    $region10: #{tpu_custom_call.1} parent=1 // pred_check
      _
    $region11: #{tpu_custom_call.1} parent=1 // pred_check_branch
      %24 = sbr.rel (0) target = $region13
    $region12: #{tpu_custom_call.1} parent=1 // pred_region
      _
    $region13: #{tpu_custom_call.1} parent=1 // pred_fallthru
      _
    // Predicated region
    $region14: #{tpu_custom_call.1} parent=1 // pred_check
      _
    $region15: #{tpu_custom_call.1} parent=1 // pred_check_branch
      %26 = sbr.rel (0) target = $region17
    $region16: #{tpu_custom_call.1} parent=1 // pred_region
      _
    $region17: #{tpu_custom_call.1} parent=1 // pred_fallthru
      _
    // Predicated region
    $region18: #{tpu_custom_call.1} parent=1 // pred_check
      _
    $region19: #{tpu_custom_call.1} parent=1 // pred_check_branch
      %28 = sbr.rel (0) target = $region21
    $region20: #{tpu_custom_call.1} parent=1 // pred_region
      _
    $region21: #{tpu_custom_call.1} parent=1 // pred_fallthru
      _
    // Predicated region
    $region22: #{tpu_custom_call.1} parent=1 // pred_check
      _
    $region23: #{tpu_custom_call.1} parent=1 // pred_check_branch
      %30 = sbr.rel (0) target = $region25
    $region24: #{tpu_custom_call.1} parent=1 // pred_region
      _
    $region25: #{tpu_custom_call.1} parent=1 // pred_fallthru
      _
    // Predicated region
    $region26: #{tpu_custom_call.1} parent=1 // pred_check
      _
    $region27: #{tpu_custom_call.1} parent=1 // pred_check_branch
      %32 = sbr.rel (0) target = $region29
    $region28: #{tpu_custom_call.1} parent=1 // pred_region
      _
    $region29: #{tpu_custom_call.1} parent=1 // pred_fallthru
      _
    // Predicated region
    $region30: #{tpu_custom_call.1} parent=1 // pred_check
      _
    $region31: #{tpu_custom_call.1} parent=1 // pred_check_branch
      %34 = sbr.rel (0) target = $region33
    $region32: #{tpu_custom_call.1} parent=1 // pred_region
      _
    $region33: #{tpu_custom_call.1} parent=1 // pred_fallthru
      _
    // Predicated region
    $region34: #{tpu_custom_call.1} parent=1 // pred_check
      _
    $region35: #{tpu_custom_call.1} parent=1 // pred_check_branch
      %36 = sbr.rel (0) target = $region37
    $region36: #{tpu_custom_call.1} parent=1 // pred_region
      _
    $region37: #{tpu_custom_call.1} parent=1 // pred_fallthru
      _
    // Predicated region
    $region38: #{tpu_custom_call.1} parent=1 // pred_check
      _
    $region39: #{tpu_custom_call.1} parent=1 // pred_check_branch
      %38 = sbr.rel (0) target = $region41
    $region40: #{tpu_custom_call.1} parent=1 // pred_region
      _
    $region41: #{tpu_custom_call.1} parent=1 // pred_fallthru
      _
    // Predicated region
    $region42: #{tpu_custom_call.1} parent=1 // pred_check
      _
    $region43: #{tpu_custom_call.1} parent=1 // pred_check_branch
      %40 = sbr.rel (0) target = $region45
    $region44: #{tpu_custom_call.1} parent=1 // pred_region
      _
    $region45: #{tpu_custom_call.1} parent=1 // pred_fallthru
      _
    // Predicated region
    $region46: #{tpu_custom_call.1} parent=1 // pred_check
      _
    $region47: #{tpu_custom_call.1} parent=1 // pred_check_branch
      %42 = sbr.rel (0) target = $region49
    $region48: #{tpu_custom_call.1} parent=1 // pred_region
      _
    $region49: #{tpu_custom_call.1} parent=1 // pred_fallthru
      _
    // Predicated region
    $region50: #{tpu_custom_call.1} parent=1 // pred_check
      _
    $region51: #{tpu_custom_call.1} parent=1 // pred_check_branch
      %44 = sbr.rel (0) target = $region53
    $region52: #{tpu_custom_call.1} parent=1 // pred_region
      _
    $region53: #{tpu_custom_call.1} parent=1 // pred_fallthru
      _
    %v48 = vld [vmem:[%s7] sm:$0xf]
    %v49 = vld [vmem:[%s7 + $0x4] sm:$0xf]
    %v50 = vld [vmem:[%s7 + $0x8] sm:$0xf]
    %v51 = vld [vmem:[%s7 + $0xc] sm:$0xf]
    %vm52 = vcmp.gt.bf16.partialorder %v48, 0
    %vm53 = vcmp.gt.bf16.partialorder %v49, 0
    %vm54 = vcmp.gt.bf16.partialorder %v50, 0
    %vm55 = vcmp.gt.bf16.partialorder %v51, 0
    %v56 = vld [vmem:[%s0] sm:$0xf]
    %v57 = vld [vmem:[%s0 + $0x4] sm:$0xf]
    %v58 = vld [vmem:[%s0 + $0x8] sm:$0xf]
    %v59 = vld [vmem:[%s0 + $0xc] sm:$0xf]
    %v60 = vld [vmem:[%s1] sm:$0xf]
    %v61 = vld [vmem:[%s1 + $0x4] sm:$0xf]
    %v66 = vunpack.c.l.b16 %v56
    %v67 = vunpack.c.l.b16 %v57
    %v68 = vunpack.c.l.b16 %v58
    %v69 = vunpack.c.l.b16 %v59
    %v70 = vpack.c.b16 %v67, %v66
    %v71 = vpack.c.b16 %v69, %v68
    %v74 = vunpack.c.l.b16 %v60
    %v75 = vunpack.c.l.b16 %v61
    %v76 = vpack.c.b16 %v75, %v74
    %vm78 = vcmask 130048
    %v80 = vsel %vm78, %v70, 0
    %v83 = vsel %vm78, %v71, 0
    %85 = vmatprep.subr.bf16.mxu0 0
    %86 = vmatpush1.bf16.msra.mxu0 %v76
    %87 = vmatprep.subr.bf16.mxu0 0
    %88 = vmatpush1.bf16.msra.mxu0 0
    %89 = vmatprep.subr.bf16.mxu0 0
    %90 = vmatpush1.bf16.msra.mxu0 0
    %91 = vmatprep.subr.bf16.mxu0 0
    %92 = vmatpush1.bf16.msra.mxu0 0
    %93 = vmatprep.subr.bf16.mxu0 0
    %94 = vmatpush1.bf16.msra.mxu0 0
    %95 = vmatprep.subr.bf16.mxu0 0
    %96 = vmatpush1.bf16.msra.mxu0 0
    %97 = vmatprep.subr.bf16.mxu0 0
    %98 = vmatpush1.bf16.msra.mxu0 0
    %99 = vmatprep.subr.bf16.mxu0 0
    %100 = vmatpush1.bf16.msra.mxu0 0
    %101 = vmatprep.subr.bf16.mxu0 0
    %102 = vmatpush1.bf16.msra.mxu0 0
    %103 = vmatprep.subr.bf16.mxu0 0
    %104 = vmatpush1.bf16.msra.mxu0 0
    %105 = vmatprep.subr.bf16.mxu0 0
    %106 = vmatpush1.bf16.msra.mxu0 0
    %107 = vmatprep.subr.bf16.mxu0 0
    %108 = vmatpush1.bf16.msra.mxu0 0
    %109 = vmatprep.subr.bf16.mxu0 0
    %110 = vmatpush1.bf16.msra.mxu0 0
    %111 = vmatprep.subr.bf16.mxu0 0
    %112 = vmatpush1.bf16.msra.mxu0 0
    %113 = vmatprep.subr.bf16.mxu0 0
    %114 = vmatpush1.bf16.msra.mxu0 0
    %115 = vmatprep.subr.bf16.mxu0 0
    %116 = vmatpush1.bf16.msra.mxu0 0
    %117 = vmatprep.mubr.bf16.mxu0 0
    %118 = vmatmul.mubr.bf16.gmra.mrb[0].mxu0 %v80
    %v119 = vpop.f32.mrb[0].mxu0
    %v120 = vadd.f32 0.0, %v119
    %v121 = vpop.f32.mrb[0].mxu0
    %v122 = vpop.f32.mrb[0].mxu0
    %v123 = vadd.f32 0.0, %v122
    %v124 = vpop.f32.mrb[0].mxu0
    %125 = vmatprep.mubr.bf16.mxu0 0
    %126 = vmatmul.mubr.bf16.gmra.mrb[0].mxu0 %v83
    %v127 = vpop.f32.mrb[0].mxu0
    %v128 = vadd.f32 0.0, %v127
    %v129 = vpop.f32.mrb[0].mxu0
    %v130 = vpop.f32.mrb[0].mxu0
    %v131 = vadd.f32 0.0, %v130
    %v132 = vpop.f32.mrb[0].mxu0
    %133 = vdwg.mxu0
    %v134 = vpack.c.bf16 %v123, %v120
    %v135 = vpack.c.bf16 %v131, %v128
    %v136 = vld [vmem:[%s2] sm:$0xff]
    %v137 = vld [vmem:[%s2 + $0x8] sm:$0xff]
    %v138 = vld [vmem:[%s2 + $0x10] sm:$0xff]
    %v139 = vld [vmem:[%s2 + $0x18] sm:$0xff]
    %vm140 = vcmask 261120
    %v142 = vsel %vm140, %v120, 0
    %v145 = vsel %vm140, %v123, 0
    %v148 = vsel %vm140, %v128, 0
    %v151 = vsel %vm140, %v131, 0
    %153 = vmatprep.subr.mxu0 0.0
    %154 = vmatpush1.msra.mxu0 %v136
    %155 = vmatprep.subr.mxu0 0.0
    %156 = vmatpush1.msra.mxu0 %v137
    %157 = vmatprep.subr.mxu0 0.0
    %158 = vmatpush1.msra.mxu0 %v138
    %159 = vmatprep.subr.mxu0 0.0
    %160 = vmatpush1.msra.mxu0 %v139
    %161 = vmatprep.subr.mxu0 0.0
    %162 = vmatpush1.msra.mxu0 0.0
    %163 = vmatprep.subr.mxu0 0.0
    %164 = vmatpush1.msra.mxu0 0.0
    %165 = vmatprep.subr.mxu0 0.0
    %166 = vmatpush1.msra.mxu0 0.0
    %167 = vmatprep.subr.mxu0 0.0
    %168 = vmatpush1.msra.mxu0 0.0
    %169 = vmatprep.subr.mxu0 0.0
    %170 = vmatpush1.msra.mxu0 0.0
    %171 = vmatprep.subr.mxu0 0.0
    %172 = vmatpush1.msra.mxu0 0.0
    %173 = vmatprep.subr.mxu0 0.0
    %174 = vmatpush1.msra.mxu0 0.0
    %175 = vmatprep.subr.mxu0 0.0
    %176 = vmatpush1.msra.mxu0 0.0
    %177 = vmatprep.subr.mxu0 0.0
    %178 = vmatpush1.msra.mxu0 0.0
    %179 = vmatprep.subr.mxu0 0.0
    %180 = vmatpush1.msra.mxu0 0.0
    %181 = vmatprep.subr.mxu0 0.0
    %182 = vmatpush1.msra.mxu0 0.0
    %183 = vmatprep.subr.mxu0 0.0
    %184 = vmatpush1.msra.mxu0 0.0
    %185 = vmatprep.subr.mxu0 0.0
    %186 = vmatpush1.msra.mxu0 0.0
    %187 = vmatprep.subr.mxu0 0.0
    %188 = vmatpush1.msra.mxu0 0.0
    %189 = vmatprep.subr.mxu0 0.0
    %190 = vmatpush1.msra.mxu0 0.0
    %191 = vmatprep.subr.mxu0 0.0
    %192 = vmatpush1.msra.mxu0 0.0
    %193 = vmatprep.subr.mxu0 0.0
    %194 = vmatpush1.msra.mxu0 0.0
    %195 = vmatprep.subr.mxu0 0.0
    %196 = vmatpush1.msra.mxu0 0.0
    %197 = vmatprep.subr.mxu0 0.0
    %198 = vmatpush1.msra.mxu0 0.0
    %199 = vmatprep.subr.mxu0 0.0
    %200 = vmatpush1.msra.mxu0 0.0
    %201 = vmatprep.subr.mxu0 0.0
    %202 = vmatpush1.msra.mxu0 0.0
    %203 = vmatprep.subr.mxu0 0.0
    %204 = vmatpush1.msra.mxu0 0.0
    %205 = vmatprep.subr.mxu0 0.0
    %206 = vmatpush1.msra.mxu0 0.0
    %207 = vmatprep.subr.mxu0 0.0
    %208 = vmatpush1.msra.mxu0 0.0
    %209 = vmatprep.subr.mxu0 0.0
    %210 = vmatpush1.msra.mxu0 0.0
    %211 = vmatprep.subr.mxu0 0.0
    %212 = vmatpush1.msra.mxu0 0.0
    %213 = vmatprep.subr.mxu0 0.0
    %214 = vmatpush1.msra.mxu0 0.0
    %215 = vmatprep.subr.mxu0 0.0
    %216 = vmatpush1.msra.mxu0 0.0
    %217 = vmatprep.mubr.f32.mxu0 0.0
    %218 = vmatmul.mubr.f32.gmra.mrb[0].mxu0 %v142
    %v219 = vpop.f32.mrb[0].mxu0
    %v220 = vadd.f32 0.0, %v219
    %v221 = vpop.f32.mrb[0].mxu0
    %222 = vmatprep.mubr.f32.mxu0 0.0
    %223 = vmatmul.mubr.f32.gmra.mrb[0].mxu0 %v145
    %v224 = vpop.f32.mrb[0].mxu0
    %v225 = vadd.f32 0.0, %v224
    %v226 = vpop.f32.mrb[0].mxu0
    %227 = vmatprep.mubr.f32.mxu0 0.0
    %228 = vmatmul.mubr.f32.gmra.mrb[0].mxu0 %v148
    %v229 = vpop.f32.mrb[0].mxu0
    %v230 = vadd.f32 0.0, %v229
    %v231 = vpop.f32.mrb[0].mxu0
    %232 = vmatprep.mubr.f32.mxu0 0.0
    %233 = vmatmul.mubr.f32.gmra.mrb[0].mxu0 %v151
    %v234 = vpop.f32.mrb[0].mxu0
    %v235 = vadd.f32 0.0, %v234
    %v236 = vpop.f32.mrb[0].mxu0
    %237 = vdwg.mxu0
    %238 = vxpose.xlu0.b32.start [1/16] %v220, 128
    %239 = vxpose.xlu0.b32.cont [2/16] %v225, 128
    %240 = vxpose.xlu0.b32.cont [3/16] %v230, 128
    %241 = vxpose.xlu0.b32.cont [4/16] %v235, 128
    %242 = vxpose.xlu0.b32.cont [5/16] 0.0, 128
    %243 = vxpose.xlu0.b32.cont [6/16] 0.0, 128
    %244 = vxpose.xlu0.b32.cont [7/16] 0.0, 128
    %245 = vxpose.xlu0.b32.cont [8/16] 0.0, 128
    %246 = vxpose.xlu0.b32.cont [9/16] 0.0, 128
    %247 = vxpose.xlu0.b32.cont [10/16] 0.0, 128
    %248 = vxpose.xlu0.b32.cont [11/16] 0.0, 128
    %249 = vxpose.xlu0.b32.cont [12/16] 0.0, 128
    %250 = vxpose.xlu0.b32.cont [13/16] 0.0, 128
    %251 = vxpose.xlu0.b32.cont [14/16] 0.0, 128
    %252 = vxpose.xlu0.b32.cont [15/16] 0.0, 128
    %253 = vxpose.xlu0.b32.end [16/16] 0.0, 128
    %v254 = vpop.trf.xlu0
    %v255 = vpop.trf.xlu0
    %v256 = vpop.trf.xlu0
    %v257 = vpop.trf.xlu0
    %v258 = vpop.trf.xlu0
    %v259 = vpop.trf.xlu0
    %v260 = vpop.trf.xlu0
    %v261 = vpop.trf.xlu0
    %v262 = vpop.trf.xlu0
    %v263 = vpop.trf.xlu0
    %v264 = vpop.trf.xlu0
    %v265 = vpop.trf.xlu0
    %v266 = vpop.trf.xlu0
    %v267 = vpop.trf.xlu0
    %v268 = vpop.trf.xlu0
    %v269 = vpop.trf.xlu0
    %271 = vset.pattern.permute.xlu0 4
    %272 = vperm.xlu0 %271, %v220
    %v273 = vpop.permute.xlu0 %272
    %276 = vset.pattern.permute.xlu0 4
    %277 = vperm.xlu0 %276, %v225
    %v278 = vpop.permute.xlu0 %277
    %281 = vset.pattern.permute.xlu0 4
    %282 = vperm.xlu0 %281, %v230
    %v283 = vpop.permute.xlu0 %282
    %286 = vset.pattern.permute.xlu0 4
    %287 = vperm.xlu0 %286, %v235
    %v288 = vpop.permute.xlu0 %287
    %v290 = vlaneseq
    %v291 = vshrl.u32 %v290, 7
    %v292 = vsub.s32 0, %v291
    %v293 = vrot.slane %v254, %v292
    %v294 = vadd.f32 %v273, %v293
    %v295 = vadd.f32 %v278, %v293
    %v296 = vadd.f32 %v283, %v293
    %v297 = vadd.f32 %v288, %v293
    %vm298 = vcmp.gt.f32.partialorder %v294, 0.0
    %vm299 = vcmp.gt.f32.partialorder %v295, 0.0
    %vm300 = vcmp.gt.f32.partialorder %v296, 0.0
    %vm301 = vcmp.gt.f32.partialorder %v297, 0.0
    %v302 = vmul.f32 %v294, 0.2
    %v303 = vmul.f32 %v295, 0.2
    %v304 = vmul.f32 %v296, 0.2
    %v305 = vmul.f32 %v297, 0.2
    %v306 = vsel %vm298, %v294, %v302
    %v307 = vsel %vm299, %v295, %v303
    %v308 = vsel %vm300, %v296, %v304
    %v309 = vsel %vm301, %v297, %v305
    %v310 = vsel %vm52, 65537, 0
    %v311 = vsel %vm53, 65537, 0
    %v312 = vsel %vm54, 65537, 0
    %v313 = vsel %vm55, 65537, 0
    %v314 = vunpack.c.l.b16 %v310
    %v315 = vunpack.c.l.b16 %v311
    %v316 = vunpack.c.l.b16 %v312
    %v317 = vunpack.c.l.b16 %v313
    %vm318 = vcmp.ne.s32.totalorder %v314, 0
    %vm319 = vcmp.ne.s32.totalorder %v315, 0
    %vm320 = vcmp.ne.s32.totalorder %v316, 0
    %vm321 = vcmp.ne.s32.totalorder %v317, 0
    %v322 = vsel %vm318, %v306, -1e+30
    %v323 = vsel %vm319, %v307, -1e+30
    %v324 = vsel %vm320, %v308, -1e+30
    %v325 = vsel %vm321, %v309, -1e+30
    %v326 = vsel %vm140, %v322, -inf
    %327 = vmax.xlane.f32.xlu0 %v326
    %v328 = vpop.xlane.xlu0 %327
    %v329 = vsel %vm140, %v323, -inf
    %330 = vmax.xlane.f32.xlu0 %v329
    %v331 = vpop.xlane.xlu0 %330
    %v332 = vsel %vm140, %v324, -inf
    %333 = vmax.xlane.f32.xlu0 %v332
    %v334 = vpop.xlane.xlu0 %333
    %v335 = vsel %vm140, %v325, -inf
    %336 = vmax.xlane.f32.xlu0 %v335
    %v337 = vpop.xlane.xlu0 %336
    %v338 = vsub.f32 %v322, %v328
    %v339 = vsub.f32 %v323, %v331
    %v340 = vsub.f32 %v324, %v334
    %v341 = vsub.f32 %v325, %v337
    %v342 = vmul.f32 %v338, 1.442695
    %v343 = vpow.pop %v342
    %v344 = vmul.f32 %v339, 1.442695
    %v345 = vpow.pop %v344
    %v346 = vmul.f32 %v340, 1.442695
    %v347 = vpow.pop %v346
    %v348 = vmul.f32 %v341, 1.442695
    %v349 = vpow.pop %v348
    %v350 = vsel %vm140, %v343, 0.0
    %351 = vadd.xlane.f32.xlu0 %v350
    %v352 = vpop.xlane.xlu0 %351
    %v353 = vsel %vm140, %v345, 0.0
    %354 = vadd.xlane.f32.xlu0 %v353
    %v355 = vpop.xlane.xlu0 %354
    %v356 = vsel %vm140, %v347, 0.0
    %357 = vadd.xlane.f32.xlu0 %v356
    %v358 = vpop.xlane.xlu0 %357
    %v359 = vsel %vm140, %v349, 0.0
    %360 = vadd.xlane.f32.xlu0 %v359
    %v361 = vpop.xlane.xlu0 %360
    %v362 = vrcp.pop %v352
    %v363 = vrcp.pop %v355
    %v364 = vrcp.pop %v358
    %v365 = vrcp.pop %v361
    %v366 = vmul.f32 %v343, %v362
    %v367 = vmul.f32 %v345, %v363
    %v368 = vmul.f32 %v347, %v364
    %v369 = vmul.f32 %v349, %v365
    %v370 = vpack.c.bf16 %v367, %v366
    %v371 = vpack.c.bf16 %v369, %v368
    %v373 = vsel %vm140, %v370, 0
    %v376 = vsel %vm140, %v371, 0
    %378 = vmatprep.subr.bf16.mxu0 0
    %379 = vmatpush1.bf16.msra.mxu0 %v134
    %380 = vmatprep.subr.bf16.mxu0 0
    %381 = vmatpush1.bf16.msra.mxu0 %v135
    %382 = vmatprep.subr.bf16.mxu0 0
    %383 = vmatpush1.bf16.msra.mxu0 0
    %384 = vmatprep.subr.bf16.mxu0 0
    %385 = vmatpush1.bf16.msra.mxu0 0
    %386 = vmatprep.subr.bf16.mxu0 0
    %387 = vmatpush1.bf16.msra.mxu0 0
    %388 = vmatprep.subr.bf16.mxu0 0
    %389 = vmatpush1.bf16.msra.mxu0 0
    %390 = vmatprep.subr.bf16.mxu0 0
    %391 = vmatpush1.bf16.msra.mxu0 0
    %392 = vmatprep.subr.bf16.mxu0 0
    %393 = vmatpush1.bf16.msra.mxu0 0
    %394 = vmatprep.subr.bf16.mxu0 0
    %395 = vmatpush1.bf16.msra.mxu0 0
    %396 = vmatprep.subr.bf16.mxu0 0
    %397 = vmatpush1.bf16.msra.mxu0 0
    %398 = vmatprep.subr.bf16.mxu0 0
    %399 = vmatpush1.bf16.msra.mxu0 0
    %400 = vmatprep.subr.bf16.mxu0 0
    %401 = vmatpush1.bf16.msra.mxu0 0
    %402 = vmatprep.subr.bf16.mxu0 0
    %403 = vmatpush1.bf16.msra.mxu0 0
    %404 = vmatprep.subr.bf16.mxu0 0
    %405 = vmatpush1.bf16.msra.mxu0 0
    %406 = vmatprep.subr.bf16.mxu0 0
    %407 = vmatpush1.bf16.msra.mxu0 0
    %408 = vmatprep.subr.bf16.mxu0 0
    %409 = vmatpush1.bf16.msra.mxu0 0
    %410 = vmatprep.mubr.bf16.mxu0 0
    %411 = vmatmul.mubr.bf16.gmra.mrb[0].mxu0 %v373
    %v412 = vpop.f32.mrb[0].mxu0
    %v413 = vadd.f32 0.0, %v412
    %v414 = vpop.f32.mrb[0].mxu0
    %v415 = vpop.f32.mrb[0].mxu0
    %v416 = vadd.f32 0.0, %v415
    %v417 = vpop.f32.mrb[0].mxu0
    %418 = vmatprep.mubr.bf16.mxu0 0
    %419 = vmatmul.mubr.bf16.gmra.mrb[0].mxu0 %v376
    %v420 = vpop.f32.mrb[0].mxu0
    %v421 = vadd.f32 0.0, %v420
    %v422 = vpop.f32.mrb[0].mxu0
    %v423 = vpop.f32.mrb[0].mxu0
    %v424 = vadd.f32 0.0, %v423
    %v425 = vpop.f32.mrb[0].mxu0
    %426 = vdwg.mxu0
    %vm427 = vcmask 64512
    %428 = vst.msk [vmem:[#allocation2] sm:$0xff] %vm427, %v413
    %429 = vst.msk [vmem:[#allocation2 + $0x8] sm:$0xff] %vm427, %v416
    %430 = vst.msk [vmem:[#allocation2 + $0x10] sm:$0xff] %vm427, %v421
    %431 = vst.msk [vmem:[#allocation2 + $0x18] sm:$0xff] %vm427, %v424
    %432 = vset.pattern.permute.xlu0 5
    %433 = vperm.xlu0 %432, %v220
    %v434 = vpop.permute.xlu0 %433
    %436 = vset.pattern.permute.xlu0 5
    %437 = vperm.xlu0 %436, %v225
    %v438 = vpop.permute.xlu0 %437
    %440 = vset.pattern.permute.xlu0 5
    %441 = vperm.xlu0 %440, %v230
    %v442 = vpop.permute.xlu0 %441
    %444 = vset.pattern.permute.xlu0 5
    %445 = vperm.xlu0 %444, %v235
    %v446 = vpop.permute.xlu0 %445
    %v448 = vlaneseq
    %v449 = vshrl.u32 %v448, 7
    %v450 = vsub.s32 1, %v449
    %v451 = vrot.slane %v254, %v450
    %v452 = vadd.f32 %v434, %v451
    %v453 = vadd.f32 %v438, %v451
    %v454 = vadd.f32 %v442, %v451
    %v455 = vadd.f32 %v446, %v451
    %vm456 = vcmp.gt.f32.partialorder %v452, 0.0
    %vm457 = vcmp.gt.f32.partialorder %v453, 0.0
    %vm458 = vcmp.gt.f32.partialorder %v454, 0.0
    %vm459 = vcmp.gt.f32.partialorder %v455, 0.0
    %v460 = vmul.f32 %v452, 0.2
    %v461 = vmul.f32 %v453, 0.2
    %v462 = vmul.f32 %v454, 0.2
    %v463 = vmul.f32 %v455, 0.2
    %v464 = vsel %vm456, %v452, %v460
    %v465 = vsel %vm457, %v453, %v461
    %v466 = vsel %vm458, %v454, %v462
    %v467 = vsel %vm459, %v455, %v463
    %v468 = vsel %vm318, %v464, -1e+30
    %v469 = vsel %vm319, %v465, -1e+30
    %v470 = vsel %vm320, %v466, -1e+30
    %v471 = vsel %vm321, %v467, -1e+30
    %v472 = vsel %vm140, %v468, -inf
    %473 = vmax.xlane.f32.xlu0 %v472
    %v474 = vpop.xlane.xlu0 %473
    %v475 = vsel %vm140, %v469, -inf
    %476 = vmax.xlane.f32.xlu0 %v475
    %v477 = vpop.xlane.xlu0 %476
    %v478 = vsel %vm140, %v470, -inf
    %479 = vmax.xlane.f32.xlu0 %v478
    %v480 = vpop.xlane.xlu0 %479
    %v481 = vsel %vm140, %v471, -inf
    %482 = vmax.xlane.f32.xlu0 %v481
    %v483 = vpop.xlane.xlu0 %482
    %v484 = vsub.f32 %v468, %v474
    %v485 = vsub.f32 %v469, %v477
    %v486 = vsub.f32 %v470, %v480
    %v487 = vsub.f32 %v471, %v483
    %v488 = vmul.f32 %v484, 1.442695
    %v489 = vpow.pop %v488
    %v490 = vmul.f32 %v485, 1.442695
    %v491 = vpow.pop %v490
    %v492 = vmul.f32 %v486, 1.442695
    %v493 = vpow.pop %v492
    %v494 = vmul.f32 %v487, 1.442695
    %v495 = vpow.pop %v494
    %v496 = vsel %vm140, %v489, 0.0
    %497 = vadd.xlane.f32.xlu0 %v496
    %v498 = vpop.xlane.xlu0 %497
    %v499 = vsel %vm140, %v491, 0.0
    %500 = vadd.xlane.f32.xlu0 %v499
    %v501 = vpop.xlane.xlu0 %500
    %v502 = vsel %vm140, %v493, 0.0
    %503 = vadd.xlane.f32.xlu0 %v502
    %v504 = vpop.xlane.xlu0 %503
    %v505 = vsel %vm140, %v495, 0.0
    %506 = vadd.xlane.f32.xlu0 %v505
    %v507 = vpop.xlane.xlu0 %506
    %v508 = vrcp.pop %v498
    %v509 = vrcp.pop %v501
    %v510 = vrcp.pop %v504
    %v511 = vrcp.pop %v507
    %v512 = vmul.f32 %v489, %v508
    %v513 = vmul.f32 %v491, %v509
    %v514 = vmul.f32 %v493, %v510
    %v515 = vmul.f32 %v495, %v511
    %v516 = vpack.c.bf16 %v513, %v512
    %v517 = vpack.c.bf16 %v515, %v514
    %520 = vrot.lane.b32.xlu0 %v134, 120
    %v521 = vpop.permute.xlu0 %520
    %522 = vrot.lane.b32.xlu0 %v135, 120
    %v523 = vpop.permute.xlu0 %522
    %v527 = vsel %vm140, %v516, 0
    %v530 = vsel %vm140, %v517, 0
    %532 = vmatprep.subr.bf16.mxu0 0
    %533 = vmatpush1.bf16.msra.mxu0 %v521
    %534 = vmatprep.subr.bf16.mxu0 0
    %535 = vmatpush1.bf16.msra.mxu0 %v523
    %536 = vmatprep.subr.bf16.mxu0 0
    %537 = vmatpush1.bf16.msra.mxu0 0
    %538 = vmatprep.subr.bf16.mxu0 0
    %539 = vmatpush1.bf16.msra.mxu0 0
    %540 = vmatprep.subr.bf16.mxu0 0
    %541 = vmatpush1.bf16.msra.mxu0 0
    %542 = vmatprep.subr.bf16.mxu0 0
    %543 = vmatpush1.bf16.msra.mxu0 0
    %544 = vmatprep.subr.bf16.mxu0 0
    %545 = vmatpush1.bf16.msra.mxu0 0
    %546 = vmatprep.subr.bf16.mxu0 0
    %547 = vmatpush1.bf16.msra.mxu0 0
    %548 = vmatprep.subr.bf16.mxu0 0
    %549 = vmatpush1.bf16.msra.mxu0 0
    %550 = vmatprep.subr.bf16.mxu0 0
    %551 = vmatpush1.bf16.msra.mxu0 0
    %552 = vmatprep.subr.bf16.mxu0 0
    %553 = vmatpush1.bf16.msra.mxu0 0
    %554 = vmatprep.subr.bf16.mxu0 0
    %555 = vmatpush1.bf16.msra.mxu0 0
    %556 = vmatprep.subr.bf16.mxu0 0
    %557 = vmatpush1.bf16.msra.mxu0 0
    %558 = vmatprep.subr.bf16.mxu0 0
    %559 = vmatpush1.bf16.msra.mxu0 0
    %560 = vmatprep.subr.bf16.mxu0 0
    %561 = vmatpush1.bf16.msra.mxu0 0
    %562 = vmatprep.subr.bf16.mxu0 0
    %563 = vmatpush1.bf16.msra.mxu0 0
    %564 = vmatprep.mubr.bf16.mxu0 0
    %565 = vmatmul.mubr.bf16.gmra.mrb[0].mxu0 %v527
    %v566 = vpop.f32.mrb[0].mxu0
    %v567 = vadd.f32 0.0, %v566
    %v568 = vpop.f32.mrb[0].mxu0
    %v569 = vpop.f32.mrb[0].mxu0
    %v570 = vadd.f32 0.0, %v569
    %v571 = vpop.f32.mrb[0].mxu0
    %572 = vmatprep.mubr.bf16.mxu0 0
    %573 = vmatmul.mubr.bf16.gmra.mrb[0].mxu0 %v530
    %v574 = vpop.f32.mrb[0].mxu0
    %v575 = vadd.f32 0.0, %v574
    %v576 = vpop.f32.mrb[0].mxu0
    %v577 = vpop.f32.mrb[0].mxu0
    %v578 = vadd.f32 0.0, %v577
    %v579 = vpop.f32.mrb[0].mxu0
    %580 = vdwg.mxu0
    %585 = vrot.lane.b32.xlu0 %v567, 8
    %v586 = vpop.permute.xlu0 %585
    %587 = vrot.lane.b32.xlu0 %v570, 8
    %v588 = vpop.permute.xlu0 %587
    %589 = vrot.lane.b32.xlu0 %v575, 8
    %v590 = vpop.permute.xlu0 %589
    %591 = vrot.lane.b32.xlu0 %v578, 8
    %v592 = vpop.permute.xlu0 %591
    %vm597 = vcmask 130112
    %598 = vst.msk [vmem:[#allocation2] sm:$0xff] %vm597, %v586
    %599 = vst.msk [vmem:[#allocation2 + $0x8] sm:$0xff] %vm597, %v588
    %600 = vst.msk [vmem:[#allocation2 + $0x10] sm:$0xff] %vm597, %v590
    %601 = vst.msk [vmem:[#allocation2 + $0x18] sm:$0xff] %vm597, %v592
    %602 = vset.pattern.permute.xlu0 6
    %603 = vperm.xlu0 %602, %v220
    %v604 = vpop.permute.xlu0 %603
    %606 = vset.pattern.permute.xlu0 6
    %607 = vperm.xlu0 %606, %v225
    %v608 = vpop.permute.xlu0 %607
    %610 = vset.pattern.permute.xlu0 6
    %611 = vperm.xlu0 %610, %v230
    %v612 = vpop.permute.xlu0 %611
    %614 = vset.pattern.permute.xlu0 6
    %615 = vperm.xlu0 %614, %v235
    %v616 = vpop.permute.xlu0 %615
    %v618 = vlaneseq
    %v619 = vshrl.u32 %v618, 7
    %v620 = vsub.s32 2, %v619
    %v621 = vrot.slane %v254, %v620
    %v622 = vadd.f32 %v604, %v621
    %v623 = vadd.f32 %v608, %v621
    %v624 = vadd.f32 %v612, %v621
    %v625 = vadd.f32 %v616, %v621
    %vm626 = vcmp.gt.f32.partialorder %v622, 0.0
    %vm627 = vcmp.gt.f32.partialorder %v623, 0.0
    %vm628 = vcmp.gt.f32.partialorder %v624, 0.0
    %vm629 = vcmp.gt.f32.partialorder %v625, 0.0
    %v630 = vmul.f32 %v622, 0.2
    %v631 = vmul.f32 %v623, 0.2
    %v632 = vmul.f32 %v624, 0.2
    %v633 = vmul.f32 %v625, 0.2
    %v634 = vsel %vm626, %v622, %v630
    %v635 = vsel %vm627, %v623, %v631
    %v636 = vsel %vm628, %v624, %v632
    %v637 = vsel %vm629, %v625, %v633
    %v638 = vsel %vm318, %v634, -1e+30
    %v639 = vsel %vm319, %v635, -1e+30
    %v640 = vsel %vm320, %v636, -1e+30
    %v641 = vsel %vm321, %v637, -1e+30
    %v642 = vsel %vm140, %v638, -inf
    %643 = vmax.xlane.f32.xlu0 %v642
    %v644 = vpop.xlane.xlu0 %643
    %v645 = vsel %vm140, %v639, -inf
    %646 = vmax.xlane.f32.xlu0 %v645
    %v647 = vpop.xlane.xlu0 %646
    %v648 = vsel %vm140, %v640, -inf
    %649 = vmax.xlane.f32.xlu0 %v648
    %v650 = vpop.xlane.xlu0 %649
    %v651 = vsel %vm140, %v641, -inf
    %652 = vmax.xlane.f32.xlu0 %v651
    %v653 = vpop.xlane.xlu0 %652
    %v654 = vsub.f32 %v638, %v644
    %v655 = vsub.f32 %v639, %v647
    %v656 = vsub.f32 %v640, %v650
    %v657 = vsub.f32 %v641, %v653
    %v658 = vmul.f32 %v654, 1.442695
    %v659 = vpow.pop %v658
    %v660 = vmul.f32 %v655, 1.442695
    %v661 = vpow.pop %v660
    %v662 = vmul.f32 %v656, 1.442695
    %v663 = vpow.pop %v662
    %v664 = vmul.f32 %v657, 1.442695
    %v665 = vpow.pop %v664
    %v666 = vsel %vm140, %v659, 0.0
    %667 = vadd.xlane.f32.xlu0 %v666
    %v668 = vpop.xlane.xlu0 %667
    %v669 = vsel %vm140, %v661, 0.0
    %670 = vadd.xlane.f32.xlu0 %v669
    %v671 = vpop.xlane.xlu0 %670
    %v672 = vsel %vm140, %v663, 0.0
    %673 = vadd.xlane.f32.xlu0 %v672
    %v674 = vpop.xlane.xlu0 %673
    %v675 = vsel %vm140, %v665, 0.0
    %676 = vadd.xlane.f32.xlu0 %v675
    %v677 = vpop.xlane.xlu0 %676
    %v678 = vrcp.pop %v668
    %v679 = vrcp.pop %v671
    %v680 = vrcp.pop %v674
    %v681 = vrcp.pop %v677
    %v682 = vmul.f32 %v659, %v678
    %v683 = vmul.f32 %v661, %v679
    %v684 = vmul.f32 %v663, %v680
    %v685 = vmul.f32 %v665, %v681
    %v686 = vpack.c.bf16 %v683, %v682
    %v687 = vpack.c.bf16 %v685, %v684
    %688 = vrot.lane.b32.xlu0 %v134, 112
    %v689 = vpop.permute.xlu0 %688
    %690 = vrot.lane.b32.xlu0 %v135, 112
    %v691 = vpop.permute.xlu0 %690
    %v695 = vsel %vm140, %v686, 0
    %v698 = vsel %vm140, %v687, 0
    %700 = vmatprep.subr.bf16.mxu0 0
    %701 = vmatpush1.bf16.msra.mxu0 %v689
    %702 = vmatprep.subr.bf16.mxu0 0
    %703 = vmatpush1.bf16.msra.mxu0 %v691
    %704 = vmatprep.subr.bf16.mxu0 0
    %705 = vmatpush1.bf16.msra.mxu0 0
    %706 = vmatprep.subr.bf16.mxu0 0
    %707 = vmatpush1.bf16.msra.mxu0 0
    %708 = vmatprep.subr.bf16.mxu0 0
    %709 = vmatpush1.bf16.msra.mxu0 0
    %710 = vmatprep.subr.bf16.mxu0 0
    %711 = vmatpush1.bf16.msra.mxu0 0
    %712 = vmatprep.subr.bf16.mxu0 0
    %713 = vmatpush1.bf16.msra.mxu0 0
    %714 = vmatprep.subr.bf16.mxu0 0
    %715 = vmatpush1.bf16.msra.mxu0 0
    %716 = vmatprep.subr.bf16.mxu0 0
    %717 = vmatpush1.bf16.msra.mxu0 0
    %718 = vmatprep.subr.bf16.mxu0 0
    %719 = vmatpush1.bf16.msra.mxu0 0
    %720 = vmatprep.subr.bf16.mxu0 0
    %721 = vmatpush1.bf16.msra.mxu0 0
    %722 = vmatprep.subr.bf16.mxu0 0
    %723 = vmatpush1.bf16.msra.mxu0 0
    %724 = vmatprep.subr.bf16.mxu0 0
    %725 = vmatpush1.bf16.msra.mxu0 0
    %726 = vmatprep.subr.bf16.mxu0 0
    %727 = vmatpush1.bf16.msra.mxu0 0
    %728 = vmatprep.subr.bf16.mxu0 0
    %729 = vmatpush1.bf16.msra.mxu0 0
    %730 = vmatprep.subr.bf16.mxu0 0
    %731 = vmatpush1.bf16.msra.mxu0 0
    %732 = vmatprep.mubr.bf16.mxu0 0
    %733 = vmatmul.mubr.bf16.gmra.mrb[0].mxu0 %v695
    %v734 = vpop.f32.mrb[0].mxu0
    %v735 = vadd.f32 0.0, %v734
    %v736 = vpop.f32.mrb[0].mxu0
    %v737 = vpop.f32.mrb[0].mxu0
    %v738 = vadd.f32 0.0, %v737
    %v739 = vpop.f32.mrb[0].mxu0
    %740 = vmatprep.mubr.bf16.mxu0 0
    %741 = vmatmul.mubr.bf16.gmra.mrb[0].mxu0 %v698
    %v742 = vpop.f32.mrb[0].mxu0
    %v743 = vadd.f32 0.0, %v742
    %v744 = vpop.f32.mrb[0].mxu0
    %v745 = vpop.f32.mrb[0].mxu0
    %v746 = vadd.f32 0.0, %v745
    %v747 = vpop.f32.mrb[0].mxu0
    %748 = vdwg.mxu0
    %753 = vrot.lane.b32.xlu0 %v735, 16
    %v754 = vpop.permute.xlu0 %753
    %755 = vrot.lane.b32.xlu0 %v738, 16
    %v756 = vpop.permute.xlu0 %755
    %757 = vrot.lane.b32.xlu0 %v743, 16
    %v758 = vpop.permute.xlu0 %757
    %759 = vrot.lane.b32.xlu0 %v746, 16
    %v760 = vpop.permute.xlu0 %759
    %vm765 = vcmask 195712
    %766 = vst.msk [vmem:[#allocation2] sm:$0xff] %vm765, %v754
    %767 = vst.msk [vmem:[#allocation2 + $0x8] sm:$0xff] %vm765, %v756
    %768 = vst.msk [vmem:[#allocation2 + $0x10] sm:$0xff] %vm765, %v758
    %769 = vst.msk [vmem:[#allocation2 + $0x18] sm:$0xff] %vm765, %v760
    %770 = vset.pattern.permute.xlu0 7
    %771 = vperm.xlu0 %770, %v220
    %v772 = vpop.permute.xlu0 %771
    %774 = vset.pattern.permute.xlu0 7
    %775 = vperm.xlu0 %774, %v225
    %v776 = vpop.permute.xlu0 %775
    %778 = vset.pattern.permute.xlu0 7
    %779 = vperm.xlu0 %778, %v230
    %v780 = vpop.permute.xlu0 %779
    %782 = vset.pattern.permute.xlu0 7
    %783 = vperm.xlu0 %782, %v235
    %v784 = vpop.permute.xlu0 %783
    %v786 = vlaneseq
    %v787 = vshrl.u32 %v786, 7
    %v788 = vsub.s32 3, %v787
    %v789 = vrot.slane %v254, %v788
    %v790 = vadd.f32 %v772, %v789
    %v791 = vadd.f32 %v776, %v789
    %v792 = vadd.f32 %v780, %v789
    %v793 = vadd.f32 %v784, %v789
    %vm794 = vcmp.gt.f32.partialorder %v790, 0.0
    %vm795 = vcmp.gt.f32.partialorder %v791, 0.0
    %vm796 = vcmp.gt.f32.partialorder %v792, 0.0
    %vm797 = vcmp.gt.f32.partialorder %v793, 0.0
    %v798 = vmul.f32 %v790, 0.2
    %v799 = vmul.f32 %v791, 0.2
    %v800 = vmul.f32 %v792, 0.2
    %v801 = vmul.f32 %v793, 0.2
    %v802 = vsel %vm794, %v790, %v798
    %v803 = vsel %vm795, %v791, %v799
    %v804 = vsel %vm796, %v792, %v800
    %v805 = vsel %vm797, %v793, %v801
    %v806 = vsel %vm318, %v802, -1e+30
    %v807 = vsel %vm319, %v803, -1e+30
    %v808 = vsel %vm320, %v804, -1e+30
    %v809 = vsel %vm321, %v805, -1e+30
    %v810 = vsel %vm140, %v806, -inf
    %811 = vmax.xlane.f32.xlu0 %v810
    %v812 = vpop.xlane.xlu0 %811
    %v813 = vsel %vm140, %v807, -inf
    %814 = vmax.xlane.f32.xlu0 %v813
    %v815 = vpop.xlane.xlu0 %814
    %v816 = vsel %vm140, %v808, -inf
    %817 = vmax.xlane.f32.xlu0 %v816
    %v818 = vpop.xlane.xlu0 %817
    %v819 = vsel %vm140, %v809, -inf
    %820 = vmax.xlane.f32.xlu0 %v819
    %v821 = vpop.xlane.xlu0 %820
    %v822 = vsub.f32 %v806, %v812
    %v823 = vsub.f32 %v807, %v815
    %v824 = vsub.f32 %v808, %v818
    %v825 = vsub.f32 %v809, %v821
    %v826 = vmul.f32 %v822, 1.442695
    %v827 = vpow.pop %v826
    %v828 = vmul.f32 %v823, 1.442695
    %v829 = vpow.pop %v828
    %v830 = vmul.f32 %v824, 1.442695
    %v831 = vpow.pop %v830
    %v832 = vmul.f32 %v825, 1.442695
    %v833 = vpow.pop %v832
    %v834 = vsel %vm140, %v827, 0.0
    %835 = vadd.xlane.f32.xlu0 %v834
    %v836 = vpop.xlane.xlu0 %835
    %v837 = vsel %vm140, %v829, 0.0
    %838 = vadd.xlane.f32.xlu0 %v837
    %v839 = vpop.xlane.xlu0 %838
    %v840 = vsel %vm140, %v831, 0.0
    %841 = vadd.xlane.f32.xlu0 %v840
    %v842 = vpop.xlane.xlu0 %841
    %v843 = vsel %vm140, %v833, 0.0
    %844 = vadd.xlane.f32.xlu0 %v843
    %v845 = vpop.xlane.xlu0 %844
    %v846 = vrcp.pop %v836
    %v847 = vrcp.pop %v839
    %v848 = vrcp.pop %v842
    %v849 = vrcp.pop %v845
    %v850 = vmul.f32 %v827, %v846
    %v851 = vmul.f32 %v829, %v847
    %v852 = vmul.f32 %v831, %v848
    %v853 = vmul.f32 %v833, %v849
    %v854 = vpack.c.bf16 %v851, %v850
    %v855 = vpack.c.bf16 %v853, %v852
    %856 = vrot.lane.b32.xlu0 %v134, 104
    %v857 = vpop.permute.xlu0 %856
    %858 = vrot.lane.b32.xlu0 %v135, 104
    %v859 = vpop.permute.xlu0 %858
    %v863 = vsel %vm140, %v854, 0
    %v866 = vsel %vm140, %v855, 0
    %868 = vmatprep.subr.bf16.mxu0 0
    %869 = vmatpush1.bf16.msra.mxu0 %v857
    %870 = vmatprep.subr.bf16.mxu0 0
    %871 = vmatpush1.bf16.msra.mxu0 %v859
    %872 = vmatprep.subr.bf16.mxu0 0
    %873 = vmatpush1.bf16.msra.mxu0 0
    %874 = vmatprep.subr.bf16.mxu0 0
    %875 = vmatpush1.bf16.msra.mxu0 0
    %876 = vmatprep.subr.bf16.mxu0 0
    %877 = vmatpush1.bf16.msra.mxu0 0
    %878 = vmatprep.subr.bf16.mxu0 0
    %879 = vmatpush1.bf16.msra.mxu0 0
    %880 = vmatprep.subr.bf16.mxu0 0
    %881 = vmatpush1.bf16.msra.mxu0 0
    %882 = vmatprep.subr.bf16.mxu0 0
    %883 = vmatpush1.bf16.msra.mxu0 0
    %884 = vmatprep.subr.bf16.mxu0 0
    %885 = vmatpush1.bf16.msra.mxu0 0
    %886 = vmatprep.subr.bf16.mxu0 0
    %887 = vmatpush1.bf16.msra.mxu0 0
    %888 = vmatprep.subr.bf16.mxu0 0
    %889 = vmatpush1.bf16.msra.mxu0 0
    %890 = vmatprep.subr.bf16.mxu0 0
    %891 = vmatpush1.bf16.msra.mxu0 0
    %892 = vmatprep.subr.bf16.mxu0 0
    %893 = vmatpush1.bf16.msra.mxu0 0
    %894 = vmatprep.subr.bf16.mxu0 0
    %895 = vmatpush1.bf16.msra.mxu0 0
    %896 = vmatprep.subr.bf16.mxu0 0
    %897 = vmatpush1.bf16.msra.mxu0 0
    %898 = vmatprep.subr.bf16.mxu0 0
    %899 = vmatpush1.bf16.msra.mxu0 0
    %900 = vmatprep.mubr.bf16.mxu0 0
    %901 = vmatmul.mubr.bf16.gmra.mrb[0].mxu0 %v863
    %v902 = vpop.f32.mrb[0].mxu0
    %v903 = vadd.f32 0.0, %v902
    %v904 = vpop.f32.mrb[0].mxu0
    %v905 = vpop.f32.mrb[0].mxu0
    %v906 = vadd.f32 0.0, %v905
    %v907 = vpop.f32.mrb[0].mxu0
    %908 = vmatprep.mubr.bf16.mxu0 0
    %909 = vmatmul.mubr.bf16.gmra.mrb[0].mxu0 %v866
    %v910 = vpop.f32.mrb[0].mxu0
    %v911 = vadd.f32 0.0, %v910
    %v912 = vpop.f32.mrb[0].mxu0
    %v913 = vpop.f32.mrb[0].mxu0
    %v914 = vadd.f32 0.0, %v913
    %v915 = vpop.f32.mrb[0].mxu0
    %916 = vdwg.mxu0
    %921 = vrot.lane.b32.xlu0 %v903, 24
    %v922 = vpop.permute.xlu0 %921
    %923 = vrot.lane.b32.xlu0 %v906, 24
    %v924 = vpop.permute.xlu0 %923
    %925 = vrot.lane.b32.xlu0 %v911, 24
    %v926 = vpop.permute.xlu0 %925
    %927 = vrot.lane.b32.xlu0 %v914, 24
    %v928 = vpop.permute.xlu0 %927
    %vm933 = vcmask 261312
    %934 = vst.msk [vmem:[#allocation2] sm:$0xff] %vm933, %v922
    %935 = vst.msk [vmem:[#allocation2 + $0x8] sm:$0xff] %vm933, %v924
    %936 = vst.msk [vmem:[#allocation2 + $0x10] sm:$0xff] %vm933, %v926
    %937 = vst.msk [vmem:[#allocation2 + $0x18] sm:$0xff] %vm933, %v928
    %v938 = vld [vmem:[#allocation2] sm:$0xff]
    %v939 = vld [vmem:[#allocation2 + $0x8] sm:$0xff]
    %v940 = vld [vmem:[#allocation2 + $0x10] sm:$0xff]
    %v941 = vld [vmem:[#allocation2 + $0x18] sm:$0xff]
    %v942 = vld [vmem:[%s3] sm:$0x1]
    %v944 = vlaneseq
    %v945 = vshrl.u32 %v944, 7
    %v946 = vsub.s32 0, %v945
    %v947 = vrot.slane %v942, %v946
    %v949 = vadd.f32 %v938, %v947
    %v950 = vadd.f32 %v939, %v947
    %v951 = vadd.f32 %v940, %v947
    %v952 = vadd.f32 %v941, %v947
    %vm953 = vcmp.gt.f32.partialorder %v949, 0.0
    %vm954 = vcmp.gt.f32.partialorder %v950, 0.0
    %vm955 = vcmp.gt.f32.partialorder %v951, 0.0
    %vm956 = vcmp.gt.f32.partialorder %v952, 0.0
    %v957 = vmin.f32 %v949, 0.0
    %v958 = vmin.f32 %v950, 0.0
    %v959 = vmin.f32 %v951, 0.0
    %v960 = vmin.f32 %v952, 0.0
    %v961 = vmul.f32 %v957, 1.442695
    %v962 = vpow.pop %v961
    %v963 = vmul.f32 %v958, 1.442695
    %v964 = vpow.pop %v963
    %v965 = vmul.f32 %v959, 1.442695
    %v966 = vpow.pop %v965
    %v967 = vmul.f32 %v960, 1.442695
    %v968 = vpow.pop %v967
    %v969 = vsub.f32 %v962, 1.0
    %v970 = vsub.f32 %v964, 1.0
    %v971 = vsub.f32 %v966, 1.0
    %v972 = vsub.f32 %v968, 1.0
    %v973 = vsel %vm953, %v949, %v969
    %v974 = vsel %vm954, %v950, %v970
    %v975 = vsel %vm955, %v951, %v971
    %v976 = vsel %vm956, %v952, %v972
    %v977 = vpack.c.bf16 %v974, %v973
    %v978 = vpack.c.bf16 %v976, %v975
    %v979 = vld [vmem:[%s4] sm:$0xf]
    %v980 = vld [vmem:[%s4 + $0x4] sm:$0xf]
    %v981 = vld [vmem:[%s4 + $0x8] sm:$0xf]
    %v982 = vld [vmem:[%s4 + $0xc] sm:$0xf]
    %v987 = vunpack.c.l.b16 %v979
    %v988 = vunpack.c.l.b16 %v980
    %v989 = vunpack.c.l.b16 %v981
    %v990 = vunpack.c.l.b16 %v982
    %v991 = vpack.c.b16 %v988, %v987
    %v992 = vpack.c.b16 %v990, %v989
    %v996 = vsel %vm140, %v977, 0
    %v999 = vsel %vm140, %v978, 0
    %1001 = vmatprep.subr.bf16.mxu0 0
    %1002 = vmatpush1.bf16.msra.mxu0 %v991
    %1003 = vmatprep.subr.bf16.mxu0 0
    %1004 = vmatpush1.bf16.msra.mxu0 %v992
    %1005 = vmatprep.subr.bf16.mxu0 0
    %1006 = vmatpush1.bf16.msra.mxu0 0
    %1007 = vmatprep.subr.bf16.mxu0 0
    %1008 = vmatpush1.bf16.msra.mxu0 0
    %1009 = vmatprep.subr.bf16.mxu0 0
    %1010 = vmatpush1.bf16.msra.mxu0 0
    %1011 = vmatprep.subr.bf16.mxu0 0
    %1012 = vmatpush1.bf16.msra.mxu0 0
    %1013 = vmatprep.subr.bf16.mxu0 0
    %1014 = vmatpush1.bf16.msra.mxu0 0
    %1015 = vmatprep.subr.bf16.mxu0 0
    %1016 = vmatpush1.bf16.msra.mxu0 0
    %1017 = vmatprep.subr.bf16.mxu0 0
    %1018 = vmatpush1.bf16.msra.mxu0 0
    %1019 = vmatprep.subr.bf16.mxu0 0
    %1020 = vmatpush1.bf16.msra.mxu0 0
    %1021 = vmatprep.subr.bf16.mxu0 0
    %1022 = vmatpush1.bf16.msra.mxu0 0
    %1023 = vmatprep.subr.bf16.mxu0 0
    %1024 = vmatpush1.bf16.msra.mxu0 0
    %1025 = vmatprep.subr.bf16.mxu0 0
    %1026 = vmatpush1.bf16.msra.mxu0 0
    %1027 = vmatprep.subr.bf16.mxu0 0
    %1028 = vmatpush1.bf16.msra.mxu0 0
    %1029 = vmatprep.subr.bf16.mxu0 0
    %1030 = vmatpush1.bf16.msra.mxu0 0
    %1031 = vmatprep.subr.bf16.mxu0 0
    %1032 = vmatpush1.bf16.msra.mxu0 0
    %1033 = vmatprep.mubr.bf16.mxu0 0
    %1034 = vmatmul.mubr.bf16.gmra.mrb[0].mxu0 %v996
    %v1035 = vpop.f32.mrb[0].mxu0
    %v1036 = vadd.f32 0.0, %v1035
    %v1037 = vpop.f32.mrb[0].mxu0
    %v1038 = vpop.f32.mrb[0].mxu0
    %v1039 = vadd.f32 0.0, %v1038
    %v1040 = vpop.f32.mrb[0].mxu0
    %1041 = vmatprep.mubr.bf16.mxu0 0
    %1042 = vmatmul.mubr.bf16.gmra.mrb[0].mxu0 %v999
    %v1043 = vpop.f32.mrb[0].mxu0
    %v1044 = vadd.f32 0.0, %v1043
    %v1045 = vpop.f32.mrb[0].mxu0
    %v1046 = vpop.f32.mrb[0].mxu0
    %v1047 = vadd.f32 0.0, %v1046
    %v1048 = vpop.f32.mrb[0].mxu0
    %1049 = vdwg.mxu0
    %v1050 = vld [vmem:[%s5] sm:$0xff]
    %v1052 = vsel %vm427, %v1036, 0
    %v1055 = vsel %vm427, %v1039, 0
    %v1058 = vsel %vm427, %v1044, 0
    %v1061 = vsel %vm427, %v1047, 0
    %1063 = vmatprep.subr.mxu0 0.0
    %1064 = vmatpush1.msra.mxu0 %v1050
    %1065 = vmatprep.subr.mxu0 0.0
    %1066 = vmatpush1.msra.mxu0 0.0
    %1067 = vmatprep.subr.mxu0 0.0
    %1068 = vmatpush1.msra.mxu0 0.0
    %1069 = vmatprep.subr.mxu0 0.0
    %1070 = vmatpush1.msra.mxu0 0.0
    %1071 = vmatprep.subr.mxu0 0.0
    %1072 = vmatpush1.msra.mxu0 0.0
    %1073 = vmatprep.subr.mxu0 0.0
    %1074 = vmatpush1.msra.mxu0 0.0
    %1075 = vmatprep.subr.mxu0 0.0
    %1076 = vmatpush1.msra.mxu0 0.0
    %1077 = vmatprep.subr.mxu0 0.0
    %1078 = vmatpush1.msra.mxu0 0.0
    %1079 = vmatprep.subr.mxu0 0.0
    %1080 = vmatpush1.msra.mxu0 0.0
    %1081 = vmatprep.subr.mxu0 0.0
    %1082 = vmatpush1.msra.mxu0 0.0
    %1083 = vmatprep.subr.mxu0 0.0
    %1084 = vmatpush1.msra.mxu0 0.0
    %1085 = vmatprep.subr.mxu0 0.0
    %1086 = vmatpush1.msra.mxu0 0.0
    %1087 = vmatprep.subr.mxu0 0.0
    %1088 = vmatpush1.msra.mxu0 0.0
    %1089 = vmatprep.subr.mxu0 0.0
    %1090 = vmatpush1.msra.mxu0 0.0
    %1091 = vmatprep.subr.mxu0 0.0
    %1092 = vmatpush1.msra.mxu0 0.0
    %1093 = vmatprep.subr.mxu0 0.0
    %1094 = vmatpush1.msra.mxu0 0.0
    %1095 = vmatprep.subr.mxu0 0.0
    %1096 = vmatpush1.msra.mxu0 0.0
    %1097 = vmatprep.subr.mxu0 0.0
    %1098 = vmatpush1.msra.mxu0 0.0
    %1099 = vmatprep.subr.mxu0 0.0
    %1100 = vmatpush1.msra.mxu0 0.0
    %1101 = vmatprep.subr.mxu0 0.0
    %1102 = vmatpush1.msra.mxu0 0.0
    %1103 = vmatprep.subr.mxu0 0.0
    %1104 = vmatpush1.msra.mxu0 0.0
    %1105 = vmatprep.subr.mxu0 0.0
    %1106 = vmatpush1.msra.mxu0 0.0
    %1107 = vmatprep.subr.mxu0 0.0
    %1108 = vmatpush1.msra.mxu0 0.0
    %1109 = vmatprep.subr.mxu0 0.0
    %1110 = vmatpush1.msra.mxu0 0.0
    %1111 = vmatprep.subr.mxu0 0.0
    %1112 = vmatpush1.msra.mxu0 0.0
    %1113 = vmatprep.subr.mxu0 0.0
    %1114 = vmatpush1.msra.mxu0 0.0
    %1115 = vmatprep.subr.mxu0 0.0
    %1116 = vmatpush1.msra.mxu0 0.0
    %1117 = vmatprep.subr.mxu0 0.0
    %1118 = vmatpush1.msra.mxu0 0.0
    %1119 = vmatprep.subr.mxu0 0.0
    %1120 = vmatpush1.msra.mxu0 0.0
    %1121 = vmatprep.subr.mxu0 0.0
    %1122 = vmatpush1.msra.mxu0 0.0
    %1123 = vmatprep.subr.mxu0 0.0
    %1124 = vmatpush1.msra.mxu0 0.0
    %1125 = vmatprep.subr.mxu0 0.0
    %1126 = vmatpush1.msra.mxu0 0.0
    %1127 = vmatprep.mubr.f32.mxu0 0.0
    %1128 = vmatmul.mubr.f32.gmra.mrb[0].mxu0 %v1052
    %v1129 = vpop.f32.mrb[0].mxu0
    %v1130 = vadd.f32 0.0, %v1129
    %v1131 = vpop.f32.mrb[0].mxu0
    %1132 = vmatprep.mubr.f32.mxu0 0.0
    %1133 = vmatmul.mubr.f32.gmra.mrb[0].mxu0 %v1055
    %v1134 = vpop.f32.mrb[0].mxu0
    %v1135 = vadd.f32 0.0, %v1134
    %v1136 = vpop.f32.mrb[0].mxu0
    %1137 = vmatprep.mubr.f32.mxu0 0.0
    %1138 = vmatmul.mubr.f32.gmra.mrb[0].mxu0 %v1058
    %v1139 = vpop.f32.mrb[0].mxu0
    %v1140 = vadd.f32 0.0, %v1139
    %v1141 = vpop.f32.mrb[0].mxu0
    %1142 = vmatprep.mubr.f32.mxu0 0.0
    %1143 = vmatmul.mubr.f32.gmra.mrb[0].mxu0 %v1061
    %v1144 = vpop.f32.mrb[0].mxu0
    %v1145 = vadd.f32 0.0, %v1144
    %v1146 = vpop.f32.mrb[0].mxu0
    %1147 = vdwg.mxu0
    %1148 = vxpose.xlu0.b32.start [1/16] %v1130, 128
    %1149 = vxpose.xlu0.b32.cont [2/16] %v1135, 128
    %1150 = vxpose.xlu0.b32.cont [3/16] %v1140, 128
    %1151 = vxpose.xlu0.b32.cont [4/16] %v1145, 128
    %1152 = vxpose.xlu0.b32.cont [5/16] 0.0, 128
    %1153 = vxpose.xlu0.b32.cont [6/16] 0.0, 128
    %1154 = vxpose.xlu0.b32.cont [7/16] 0.0, 128
    %1155 = vxpose.xlu0.b32.cont [8/16] 0.0, 128
    %1156 = vxpose.xlu0.b32.cont [9/16] 0.0, 128
    %1157 = vxpose.xlu0.b32.cont [10/16] 0.0, 128
    %1158 = vxpose.xlu0.b32.cont [11/16] 0.0, 128
    %1159 = vxpose.xlu0.b32.cont [12/16] 0.0, 128
    %1160 = vxpose.xlu0.b32.cont [13/16] 0.0, 128
    %1161 = vxpose.xlu0.b32.cont [14/16] 0.0, 128
    %1162 = vxpose.xlu0.b32.cont [15/16] 0.0, 128
    %1163 = vxpose.xlu0.b32.end [16/16] 0.0, 128
    %v1164 = vpop.trf.xlu0
    %v1165 = vpop.trf.xlu0
    %v1166 = vpop.trf.xlu0
    %v1167 = vpop.trf.xlu0
    %v1168 = vpop.trf.xlu0
    %v1169 = vpop.trf.xlu0
    %v1170 = vpop.trf.xlu0
    %v1171 = vpop.trf.xlu0
    %v1172 = vpop.trf.xlu0
    %v1173 = vpop.trf.xlu0
    %v1174 = vpop.trf.xlu0
    %v1175 = vpop.trf.xlu0
    %v1176 = vpop.trf.xlu0
    %v1177 = vpop.trf.xlu0
    %v1178 = vpop.trf.xlu0
    %v1179 = vpop.trf.xlu0
    %v1180 = vpack.c.bf16 %v1039, %v1036
    %v1181 = vpack.c.bf16 %v1047, %v1044
    %1183 = vset.pattern.permute.xlu0 1
    %1184 = vperm.xlu0 %1183, %v1130
    %v1185 = vpop.permute.xlu0 %1184
    %1188 = vset.pattern.permute.xlu0 1
    %1189 = vperm.xlu0 %1188, %v1135
    %v1190 = vpop.permute.xlu0 %1189
    %1193 = vset.pattern.permute.xlu0 1
    %1194 = vperm.xlu0 %1193, %v1140
    %v1195 = vpop.permute.xlu0 %1194
    %1198 = vset.pattern.permute.xlu0 1
    %1199 = vperm.xlu0 %1198, %v1145
    %v1200 = vpop.permute.xlu0 %1199
    %v1202 = vlaneseq
    %v1203 = vshrl.u32 %v1202, 7
    %v1204 = vsub.s32 0, %v1203
    %v1205 = vrot.slane %v1164, %v1204
    %v1206 = vadd.f32 %v1185, %v1205
    %v1207 = vadd.f32 %v1190, %v1205
    %v1208 = vadd.f32 %v1195, %v1205
    %v1209 = vadd.f32 %v1200, %v1205
    %vm1210 = vcmp.gt.f32.partialorder %v1206, 0.0
    %vm1211 = vcmp.gt.f32.partialorder %v1207, 0.0
    %vm1212 = vcmp.gt.f32.partialorder %v1208, 0.0
    %vm1213 = vcmp.gt.f32.partialorder %v1209, 0.0
    %v1214 = vmul.f32 %v1206, 0.2
    %v1215 = vmul.f32 %v1207, 0.2
    %v1216 = vmul.f32 %v1208, 0.2
    %v1217 = vmul.f32 %v1209, 0.2
    %v1218 = vsel %vm1210, %v1206, %v1214
    %v1219 = vsel %vm1211, %v1207, %v1215
    %v1220 = vsel %vm1212, %v1208, %v1216
    %v1221 = vsel %vm1213, %v1209, %v1217
    %v1222 = vsel %vm318, %v1218, -1e+30
    %v1223 = vsel %vm319, %v1219, -1e+30
    %v1224 = vsel %vm320, %v1220, -1e+30
    %v1225 = vsel %vm321, %v1221, -1e+30
    %v1226 = vsel %vm140, %v1222, -inf
    %1227 = vmax.xlane.f32.xlu0 %v1226
    %v1228 = vpop.xlane.xlu0 %1227
    %v1229 = vsel %vm140, %v1223, -inf
    %1230 = vmax.xlane.f32.xlu0 %v1229
    %v1231 = vpop.xlane.xlu0 %1230
    %v1232 = vsel %vm140, %v1224, -inf
    %1233 = vmax.xlane.f32.xlu0 %v1232
    %v1234 = vpop.xlane.xlu0 %1233
    %v1235 = vsel %vm140, %v1225, -inf
    %1236 = vmax.xlane.f32.xlu0 %v1235
    %v1237 = vpop.xlane.xlu0 %1236
    %v1238 = vsub.f32 %v1222, %v1228
    %v1239 = vsub.f32 %v1223, %v1231
    %v1240 = vsub.f32 %v1224, %v1234
    %v1241 = vsub.f32 %v1225, %v1237
    %v1242 = vmul.f32 %v1238, 1.442695
    %v1243 = vpow.pop %v1242
    %v1244 = vmul.f32 %v1239, 1.442695
    %v1245 = vpow.pop %v1244
    %v1246 = vmul.f32 %v1240, 1.442695
    %v1247 = vpow.pop %v1246
    %v1248 = vmul.f32 %v1241, 1.442695
    %v1249 = vpow.pop %v1248
    %v1250 = vsel %vm140, %v1243, 0.0
    %1251 = vadd.xlane.f32.xlu0 %v1250
    %v1252 = vpop.xlane.xlu0 %1251
    %v1253 = vsel %vm140, %v1245, 0.0
    %1254 = vadd.xlane.f32.xlu0 %v1253
    %v1255 = vpop.xlane.xlu0 %1254
    %v1256 = vsel %vm140, %v1247, 0.0
    %1257 = vadd.xlane.f32.xlu0 %v1256
    %v1258 = vpop.xlane.xlu0 %1257
    %v1259 = vsel %vm140, %v1249, 0.0
    %1260 = vadd.xlane.f32.xlu0 %v1259
    %v1261 = vpop.xlane.xlu0 %1260
    %v1262 = vrcp.pop %v1252
    %v1263 = vrcp.pop %v1255
    %v1264 = vrcp.pop %v1258
    %v1265 = vrcp.pop %v1261
    %v1266 = vmul.f32 %v1243, %v1262
    %v1267 = vmul.f32 %v1245, %v1263
    %v1268 = vmul.f32 %v1247, %v1264
    %v1269 = vmul.f32 %v1249, %v1265
    %v1270 = vpack.c.bf16 %v1267, %v1266
    %v1271 = vpack.c.bf16 %v1269, %v1268
    %v1272 = vld [vmem:[%s6] sm:$0x1]
    %v1274 = vlaneseq
    %v1275 = vshrl.u32 %v1274, 7
    %v1276 = vsub.s32 0, %v1275
    %v1277 = vrot.slane %v1272, %v1276
    %v1280 = vsel %vm140, %v1270, 0
    %v1283 = vsel %vm140, %v1271, 0
    %1285 = vmatprep.subr.bf16.mxu0 0
    %1286 = vmatpush1.bf16.msra.mxu0 %v1180
    %1287 = vmatprep.subr.bf16.mxu0 0
    %1288 = vmatpush1.bf16.msra.mxu0 %v1181
    %1289 = vmatprep.subr.bf16.mxu0 0
    %1290 = vmatpush1.bf16.msra.mxu0 0
    %1291 = vmatprep.subr.bf16.mxu0 0
    %1292 = vmatpush1.bf16.msra.mxu0 0
    %1293 = vmatprep.subr.bf16.mxu0 0
    %1294 = vmatpush1.bf16.msra.mxu0 0
    %1295 = vmatprep.subr.bf16.mxu0 0
    %1296 = vmatpush1.bf16.msra.mxu0 0
    %1297 = vmatprep.subr.bf16.mxu0 0
    %1298 = vmatpush1.bf16.msra.mxu0 0
    %1299 = vmatprep.subr.bf16.mxu0 0
    %1300 = vmatpush1.bf16.msra.mxu0 0
    %1301 = vmatprep.subr.bf16.mxu0 0
    %1302 = vmatpush1.bf16.msra.mxu0 0
    %1303 = vmatprep.subr.bf16.mxu0 0
    %1304 = vmatpush1.bf16.msra.mxu0 0
    %1305 = vmatprep.subr.bf16.mxu0 0
    %1306 = vmatpush1.bf16.msra.mxu0 0
    %1307 = vmatprep.subr.bf16.mxu0 0
    %1308 = vmatpush1.bf16.msra.mxu0 0
    %1309 = vmatprep.subr.bf16.mxu0 0
    %1310 = vmatpush1.bf16.msra.mxu0 0
    %1311 = vmatprep.subr.bf16.mxu0 0
    %1312 = vmatpush1.bf16.msra.mxu0 0
    %1313 = vmatprep.subr.bf16.mxu0 0
    %1314 = vmatpush1.bf16.msra.mxu0 0
    %1315 = vmatprep.subr.bf16.mxu0 0
    %1316 = vmatpush1.bf16.msra.mxu0 0
    %1317 = vmatprep.mubr.bf16.mxu0 0
    %1318 = vmatmul.mubr.bf16.gmra.mrb[0].mxu0 %v1280
    %v1319 = vpop.f32.mrb[0].mxu0
    %v1320 = vadd.f32 %v1277, %v1319
    %v1321 = vpop.f32.mrb[0].mxu0
    %v1322 = vpop.f32.mrb[0].mxu0
    %v1323 = vadd.f32 %v1277, %v1322
    %v1324 = vpop.f32.mrb[0].mxu0
    %1325 = vmatprep.mubr.bf16.mxu0 0
    %1326 = vmatmul.mubr.bf16.gmra.mrb[0].mxu0 %v1283
    %v1327 = vpop.f32.mrb[0].mxu0
    %v1328 = vadd.f32 %v1277, %v1327
    %v1329 = vpop.f32.mrb[0].mxu0
    %v1330 = vpop.f32.mrb[0].mxu0
    %v1331 = vadd.f32 %v1277, %v1330
    %v1332 = vpop.f32.mrb[0].mxu0
    %1333 = vdwg.mxu0
    %v1334 = vmax.f32 %v1320, 0.0
    %v1335 = vmax.f32 %v1323, 0.0
    %v1336 = vmax.f32 %v1328, 0.0
    %v1337 = vmax.f32 %v1331, 0.0
    %v1338 = vld [vmem:[%s8] sm:$0x3]
    %v1340 = vsel %vm140, %v1338, 0
    %1342 = vmatprep.subr.mxu0 0.0
    %1343 = vmatpush1.msra.mxu0 %v1334
    %1344 = vmatprep.subr.mxu0 0.0
    %1345 = vmatpush1.msra.mxu0 %v1335
    %1346 = vmatprep.subr.mxu0 0.0
    %1347 = vmatpush1.msra.mxu0 %v1336
    %1348 = vmatprep.subr.mxu0 0.0
    %1349 = vmatpush1.msra.mxu0 %v1337
    %1350 = vmatprep.subr.mxu0 0.0
    %1351 = vmatpush1.msra.mxu0 0.0
    %1352 = vmatprep.subr.mxu0 0.0
    %1353 = vmatpush1.msra.mxu0 0.0
    %1354 = vmatprep.subr.mxu0 0.0
    %1355 = vmatpush1.msra.mxu0 0.0
    %1356 = vmatprep.subr.mxu0 0.0
    %1357 = vmatpush1.msra.mxu0 0.0
    %1358 = vmatprep.subr.mxu0 0.0
    %1359 = vmatpush1.msra.mxu0 0.0
    %1360 = vmatprep.subr.mxu0 0.0
    %1361 = vmatpush1.msra.mxu0 0.0
    %1362 = vmatprep.subr.mxu0 0.0
    %1363 = vmatpush1.msra.mxu0 0.0
    %1364 = vmatprep.subr.mxu0 0.0
    %1365 = vmatpush1.msra.mxu0 0.0
    %1366 = vmatprep.subr.mxu0 0.0
    %1367 = vmatpush1.msra.mxu0 0.0
    %1368 = vmatprep.subr.mxu0 0.0
    %1369 = vmatpush1.msra.mxu0 0.0
    %1370 = vmatprep.subr.mxu0 0.0
    %1371 = vmatpush1.msra.mxu0 0.0
    %1372 = vmatprep.subr.mxu0 0.0
    %1373 = vmatpush1.msra.mxu0 0.0
    %1374 = vmatprep.subr.mxu0 0.0
    %1375 = vmatpush1.msra.mxu0 0.0
    %1376 = vmatprep.subr.mxu0 0.0
    %1377 = vmatpush1.msra.mxu0 0.0
    %1378 = vmatprep.subr.mxu0 0.0
    %1379 = vmatpush1.msra.mxu0 0.0
    %1380 = vmatprep.subr.mxu0 0.0
    %1381 = vmatpush1.msra.mxu0 0.0
    %1382 = vmatprep.subr.mxu0 0.0
    %1383 = vmatpush1.msra.mxu0 0.0
    %1384 = vmatprep.subr.mxu0 0.0
    %1385 = vmatpush1.msra.mxu0 0.0
    %1386 = vmatprep.subr.mxu0 0.0
    %1387 = vmatpush1.msra.mxu0 0.0
    %1388 = vmatprep.subr.mxu0 0.0
    %1389 = vmatpush1.msra.mxu0 0.0
    %1390 = vmatprep.subr.mxu0 0.0
    %1391 = vmatpush1.msra.mxu0 0.0
    %1392 = vmatprep.subr.mxu0 0.0
    %1393 = vmatpush1.msra.mxu0 0.0
    %1394 = vmatprep.subr.mxu0 0.0
    %1395 = vmatpush1.msra.mxu0 0.0
    %1396 = vmatprep.subr.mxu0 0.0
    %1397 = vmatpush1.msra.mxu0 0.0
    %1398 = vmatprep.subr.mxu0 0.0
    %1399 = vmatpush1.msra.mxu0 0.0
    %1400 = vmatprep.subr.mxu0 0.0
    %1401 = vmatpush1.msra.mxu0 0.0
    %1402 = vmatprep.subr.mxu0 0.0
    %1403 = vmatpush1.msra.mxu0 0.0
    %1404 = vmatprep.subr.mxu0 0.0
    %1405 = vmatpush1.msra.mxu0 0.0
    %1406 = vmatprep.mubr.f32.mxu0 0.0
    %1407 = vmatmul.mubr.f32.gmra.mrb[0].mxu0 %v1340
    %v1408 = vpop.f32.mrb[0].mxu0
    %v1409 = vadd.f32 0.0, %v1408
    %v1410 = vpop.f32.mrb[0].mxu0
    %1411 = vdwg.mxu0
    %v1412 = vld [vmem:[%s9] sm:$0xff]
    %v1413 = vld [vmem:[%s10] sm:$0x1]
    %v1415 = vlaneseq
    %v1416 = vshrl.u32 %v1415, 7
    %v1417 = vsub.s32 0, %v1416
    %v1418 = vrot.slane %v1413, %v1417
    %v1421 = vsel %vm427, %v1409, 0
    %1423 = vmatprep.subr.mxu0 0.0
    %1424 = vmatpush1.msra.mxu0 %v1412
    %1425 = vmatprep.subr.mxu0 0.0
    %1426 = vmatpush1.msra.mxu0 0.0
    %1427 = vmatprep.subr.mxu0 0.0
    %1428 = vmatpush1.msra.mxu0 0.0
    %1429 = vmatprep.subr.mxu0 0.0
    %1430 = vmatpush1.msra.mxu0 0.0
    %1431 = vmatprep.subr.mxu0 0.0
    %1432 = vmatpush1.msra.mxu0 0.0
    %1433 = vmatprep.subr.mxu0 0.0
    %1434 = vmatpush1.msra.mxu0 0.0
    %1435 = vmatprep.subr.mxu0 0.0
    %1436 = vmatpush1.msra.mxu0 0.0
    %1437 = vmatprep.subr.mxu0 0.0
    %1438 = vmatpush1.msra.mxu0 0.0
    %1439 = vmatprep.subr.mxu0 0.0
    %1440 = vmatpush1.msra.mxu0 0.0
    %1441 = vmatprep.subr.mxu0 0.0
    %1442 = vmatpush1.msra.mxu0 0.0
    %1443 = vmatprep.subr.mxu0 0.0
    %1444 = vmatpush1.msra.mxu0 0.0
    %1445 = vmatprep.subr.mxu0 0.0
    %1446 = vmatpush1.msra.mxu0 0.0
    %1447 = vmatprep.subr.mxu0 0.0
    %1448 = vmatpush1.msra.mxu0 0.0
    %1449 = vmatprep.subr.mxu0 0.0
    %1450 = vmatpush1.msra.mxu0 0.0
    %1451 = vmatprep.subr.mxu0 0.0
    %1452 = vmatpush1.msra.mxu0 0.0
    %1453 = vmatprep.subr.mxu0 0.0
    %1454 = vmatpush1.msra.mxu0 0.0
    %1455 = vmatprep.subr.mxu0 0.0
    %1456 = vmatpush1.msra.mxu0 0.0
    %1457 = vmatprep.subr.mxu0 0.0
    %1458 = vmatpush1.msra.mxu0 0.0
    %1459 = vmatprep.subr.mxu0 0.0
    %1460 = vmatpush1.msra.mxu0 0.0
    %1461 = vmatprep.subr.mxu0 0.0
    %1462 = vmatpush1.msra.mxu0 0.0
    %1463 = vmatprep.subr.mxu0 0.0
    %1464 = vmatpush1.msra.mxu0 0.0
    %1465 = vmatprep.subr.mxu0 0.0
    %1466 = vmatpush1.msra.mxu0 0.0
    %1467 = vmatprep.subr.mxu0 0.0
    %1468 = vmatpush1.msra.mxu0 0.0
    %1469 = vmatprep.subr.mxu0 0.0
    %1470 = vmatpush1.msra.mxu0 0.0
    %1471 = vmatprep.subr.mxu0 0.0
    %1472 = vmatpush1.msra.mxu0 0.0
    %1473 = vmatprep.subr.mxu0 0.0
    %1474 = vmatpush1.msra.mxu0 0.0
    %1475 = vmatprep.subr.mxu0 0.0
    %1476 = vmatpush1.msra.mxu0 0.0
    %1477 = vmatprep.subr.mxu0 0.0
    %1478 = vmatpush1.msra.mxu0 0.0
    %1479 = vmatprep.subr.mxu0 0.0
    %1480 = vmatpush1.msra.mxu0 0.0
    %1481 = vmatprep.subr.mxu0 0.0
    %1482 = vmatpush1.msra.mxu0 0.0
    %1483 = vmatprep.subr.mxu0 0.0
    %1484 = vmatpush1.msra.mxu0 0.0
    %1485 = vmatprep.subr.mxu0 0.0
    %1486 = vmatpush1.msra.mxu0 0.0
    %1487 = vmatprep.mubr.f32.mxu0 0.0
    %1488 = vmatmul.mubr.f32.gmra.mrb[0].mxu0 %v1421
    %v1489 = vpop.f32.mrb[0].mxu0
    %v1490 = vadd.f32 %v1418, %v1489
    %v1491 = vpop.f32.mrb[0].mxu0
    %1492 = vdwg.mxu0
    %v1493 = vmax.f32 %v1490, 0.0
    %v1494 = vld [vmem:[%s11] sm:$0xff]
    %v1495 = vld [vmem:[%s11 + $0x8] sm:$0xff]
    %v1496 = vld [vmem:[%s12] sm:$0x1]
    %v1498 = vlaneseq
    %v1499 = vshrl.u32 %v1498, 7
    %v1500 = vsub.s32 0, %v1499
    %v1501 = vrot.slane %v1496, %v1500
    %v1504 = vsel %vm78, %v1493, 0
    %1506 = vmatprep.subr.mxu0 0.0
    %1507 = vmatpush1.msra.mxu0 %v1494
    %1508 = vmatprep.subr.mxu0 0.0
    %1509 = vmatpush1.msra.mxu0 %v1495
    %1510 = vmatprep.subr.mxu0 0.0
    %1511 = vmatpush1.msra.mxu0 0.0
    %1512 = vmatprep.subr.mxu0 0.0
    %1513 = vmatpush1.msra.mxu0 0.0
    %1514 = vmatprep.subr.mxu0 0.0
    %1515 = vmatpush1.msra.mxu0 0.0
    %1516 = vmatprep.subr.mxu0 0.0
    %1517 = vmatpush1.msra.mxu0 0.0
    %1518 = vmatprep.subr.mxu0 0.0
    %1519 = vmatpush1.msra.mxu0 0.0
    %1520 = vmatprep.subr.mxu0 0.0
    %1521 = vmatpush1.msra.mxu0 0.0
    %1522 = vmatprep.subr.mxu0 0.0
    %1523 = vmatpush1.msra.mxu0 0.0
    %1524 = vmatprep.subr.mxu0 0.0
    %1525 = vmatpush1.msra.mxu0 0.0
    %1526 = vmatprep.subr.mxu0 0.0
    %1527 = vmatpush1.msra.mxu0 0.0
    %1528 = vmatprep.subr.mxu0 0.0
    %1529 = vmatpush1.msra.mxu0 0.0
    %1530 = vmatprep.subr.mxu0 0.0
    %1531 = vmatpush1.msra.mxu0 0.0
    %1532 = vmatprep.subr.mxu0 0.0
    %1533 = vmatpush1.msra.mxu0 0.0
    %1534 = vmatprep.subr.mxu0 0.0
    %1535 = vmatpush1.msra.mxu0 0.0
    %1536 = vmatprep.subr.mxu0 0.0
    %1537 = vmatpush1.msra.mxu0 0.0
    %1538 = vmatprep.subr.mxu0 0.0
    %1539 = vmatpush1.msra.mxu0 0.0
    %1540 = vmatprep.subr.mxu0 0.0
    %1541 = vmatpush1.msra.mxu0 0.0
    %1542 = vmatprep.subr.mxu0 0.0
    %1543 = vmatpush1.msra.mxu0 0.0
    %1544 = vmatprep.subr.mxu0 0.0
    %1545 = vmatpush1.msra.mxu0 0.0
    %1546 = vmatprep.subr.mxu0 0.0
    %1547 = vmatpush1.msra.mxu0 0.0
    %1548 = vmatprep.subr.mxu0 0.0
    %1549 = vmatpush1.msra.mxu0 0.0
    %1550 = vmatprep.subr.mxu0 0.0
    %1551 = vmatpush1.msra.mxu0 0.0
    %1552 = vmatprep.subr.mxu0 0.0
    %1553 = vmatpush1.msra.mxu0 0.0
    %1554 = vmatprep.subr.mxu0 0.0
    %1555 = vmatpush1.msra.mxu0 0.0
    %1556 = vmatprep.subr.mxu0 0.0
    %1557 = vmatpush1.msra.mxu0 0.0
    %1558 = vmatprep.subr.mxu0 0.0
    %1559 = vmatpush1.msra.mxu0 0.0
    %1560 = vmatprep.subr.mxu0 0.0
    %1561 = vmatpush1.msra.mxu0 0.0
    %1562 = vmatprep.subr.mxu0 0.0
    %1563 = vmatpush1.msra.mxu0 0.0
    %1564 = vmatprep.subr.mxu0 0.0
    %1565 = vmatpush1.msra.mxu0 0.0
    %1566 = vmatprep.subr.mxu0 0.0
    %1567 = vmatpush1.msra.mxu0 0.0
    %1568 = vmatprep.subr.mxu0 0.0
    %1569 = vmatpush1.msra.mxu0 0.0
    %1570 = vmatprep.mubr.f32.mxu0 0.0
    %1571 = vmatmul.mubr.f32.gmra.mrb[0].mxu0 %v1504
    %v1572 = vpop.f32.mrb[0].mxu0
    %v1573 = vadd.f32 %v1501, %v1572
    %v1574 = vpop.f32.mrb[0].mxu0
    %1575 = vdwg.mxu0
    %vm1576 = vcmask 25600
    %1577 = vst.msk [vmem:[#allocation3] sm:$0x3] %vm1576, %v1573
    // Predicated region
    $region54: #{tpu_custom_call.1} parent=1 // pred_check
      _
    $region55: #{tpu_custom_call.1} parent=1 // pred_check_branch
      %1579 = sbr.rel (0) target = $region57
    $region56: #{tpu_custom_call.1} parent=1 // pred_region
      %s1581 = ssub.s32 32, 32
      %1582 = vsyncadd [#allocation4], %s1581
      %s1584 = sshll.u32 [#allocation3], 4
      %s1585 = int_to_ptr.vmem [resolvable:$true] %s1584
      %1587 = dma.vmem_to_hbm [thread:$0]  %s1585, 32, %s13, [#allocation4]
    $region57: #{tpu_custom_call.1} parent=1 // pred_fallthru
      _
    // Predicated region
    $region58: #{tpu_custom_call.1} parent=1 // pred_check
      _
    $region59: #{tpu_custom_call.1} parent=1 // pred_check_branch
      %1589 = sbr.rel (0) target = $region61
    $region60: #{tpu_custom_call.1} parent=1 // pred_region
      %1590 = dma.done [#allocation4], 32
    $region61: #{tpu_custom_call.1} parent=1 // pred_fallthru
      _
    %1591 = vsyncpa [#allocation4], 1

</llo_original>
